<compile_context>
chip_gen: v6e
topology: v6e:2x2x1
jax: 0.10.0
libtpu: 0.0.40
codegen_flags: <defaults>
</compile_context>

<pallas_src>
import jax
import jax.numpy as jnp
from jax.experimental import pallas as pl
from jax.experimental.pallas import tpu as pltpu

EMBED_DIM = 1000          # logical hidden width (matches the PyTorch module)
EMBED_PAD = 1024          # hidden width padded to a multiple of 128
LANE = 128
MAX_BATCH_TILE = 512      # MXU M dim multiple of 256; (TB,1024) f32 hidden = 2 MiB


def _round_up(x, m):
    return ((x + m - 1) // m) * m


def _mlp_kernel(x_ref, w1_ref, b1_ref, w2_ref, b2_ref, o_ref):
    # x_ref : (TB, seq_len)         f32   (cast to bf16 in-kernel)
    # w1_ref: (seq_len, EMBED_PAD)  bf16    b1_ref: (1, EMBED_PAD)  bf16
    # w2_ref: (EMBED_PAD, PRED_PAD) bf16    b2_ref: (1, PRED_PAD)   f32
    # o_ref : (TB, PRED_PAD)        f32
    x = x_ref[...].astype(jnp.bfloat16)
    h = jnp.dot(x, w1_ref[...], preferred_element_type=jnp.float32)
    # bf16 epilogue: bias + ReLU on the packed bf16 VALU (v6e/v7x); this is
    # also the cast that layer-2's MXU needs anyway.
    h = jnp.maximum(h.astype(jnp.bfloat16) + b1_ref[...], 0.0)
    o = jnp.dot(h, w2_ref[...], preferred_element_type=jnp.float32)
    o_ref[...] = o + b2_ref[...]


def prepare_params(w1, b1, w2, b2):
    """One-time weight prep (zero-pad + bf16 cast). Call OUTSIDE the hot loop.

    w1: (seq_len, 1000), b1: (1000,), w2: (1000, pred_len), b2: (pred_len,)
    i.e. nn.Linear weights stored transposed to (in_features, out_features).
    Zero padding is mathematically inert through matmul + bias + ReLU.
    """
    seq_len, embed = w1.shape
    assert embed == EMBED_DIM and w2.shape[0] == EMBED_DIM
    pred_len = w2.shape[1]
    pred_pad = _round_up(max(pred_len, LANE), LANE)
    w1p = jnp.pad(w1.astype(jnp.bfloat16), ((0, 0), (0, EMBED_PAD - embed)))
    b1p = jnp.pad(b1.astype(jnp.bfloat16).reshape(1, embed),
                  ((0, 0), (0, EMBED_PAD - embed)))
    w2p = jnp.pad(w2.astype(jnp.bfloat16),
                  ((0, EMBED_PAD - embed), (0, pred_pad - pred_len)))
    b2p = jnp.pad(b2.astype(jnp.float32).reshape(1, pred_len),
                  ((0, 0), (0, pred_pad - pred_len)))
    return {"w1": w1p, "b1": b1p, "w2": w2p, "b2": b2p, "pred_len": pred_len}


def custom_linear_forward(batch_x, params):
    """batch_x: (B, seq_len, 1) f32; params from prepare_params()
    -> (B, pred_len, 1) f32."""
    B, seq_len, _ = batch_x.shape
    w1p, b1p, w2p, b2p = params["w1"], params["b1"], params["w2"], params["b2"]
    pred_len = params["pred_len"]
    pred_pad = w2p.shape[1]
    assert w1p.shape[0] == seq_len

    x2d = batch_x.reshape(B, seq_len)          # free bitcast, stays f32 in HBM

    # Batch tiling: multiple of 8; ragged last tile handled by Pallas.
    tb = min(MAX_BATCH_TILE, _round_up(B, 8))
    if B > 8 and pl.cdiv(B, tb) < 2:
        # v7x: guarantee >= 2 grid steps so the "parallel" batch axis can
        # split across both TensorCores (no-op on single-TC v5e/v6e).
        tb = _round_up(pl.cdiv(B, 2), 8)
    grid = (pl.cdiv(B, tb),)

    # Working-set-derived VMEM limit (v5e default scoped VMEM is only 16 MiB);
    # 2x margin for compiler scratch, capped at v7x's 64 MiB physical VMEM.
    vmem_bytes = (2 * tb * seq_len * 4            # x tiles, double-buffered f32
                  + seq_len * EMBED_PAD * 2       # w1 resident bf16
                  + EMBED_PAD * 2                 # b1 bf16
                  + EMBED_PAD * pred_pad * 2      # w2 resident bf16
                  + pred_pad * 4                  # b2 f32
                  + 2 * tb * pred_pad * 4         # out tiles, double-buffered f32
                  + tb * EMBED_PAD * 6)           # hidden f32 acc + bf16 copy
    vmem_limit = int(min(max(2 * vmem_bytes, 32 << 20), 64 << 20))

    b_eff = grid[0] * tb
    cost = pl.CostEstimate(
        flops=2 * b_eff * seq_len * EMBED_PAD + 2 * b_eff * EMBED_PAD * pred_pad,
        transcendentals=0,
        bytes_accessed=int(B * seq_len * 4 + w1p.size * 2 + w2p.size * 2
                           + b1p.size * 2 + b2p.size * 4 + B * pred_pad * 4))

    def run(single_buffer_weights):
        # Constant-index operands stay resident in VMEM across grid steps;
        # with Buffered(1) they also skip the pointless second pipeline buffer.
        w_mode = pl.Buffered(1) if single_buffer_weights else None
        return pl.pallas_call(
            _mlp_kernel,
            out_shape=jax.ShapeDtypeStruct((B, pred_pad), jnp.float32),
            grid=grid,
            in_specs=[
                pl.BlockSpec((tb, seq_len), lambda i: (i, 0)),        # x (pipelined)
                pl.BlockSpec((seq_len, EMBED_PAD), lambda i: (0, 0),  # w1 resident
                             pipeline_mode=w_mode),
                pl.BlockSpec((1, EMBED_PAD), lambda i: (0, 0),        # b1 resident
                             pipeline_mode=w_mode),
                pl.BlockSpec((EMBED_PAD, pred_pad), lambda i: (0, 0), # w2 resident
                             pipeline_mode=w_mode),
                pl.BlockSpec((1, pred_pad), lambda i: (0, 0),         # b2 resident
                             pipeline_mode=w_mode),
            ],
            out_specs=pl.BlockSpec((tb, pred_pad), lambda i: (i, 0)), # lane-dense
            compiler_params=pltpu.CompilerParams(
                dimension_semantics=("parallel",),
                vmem_limit_bytes=vmem_limit),
            cost_estimate=cost,
        )(x2d, w1p, b1p, w2p, b2p)

    try:
        out2d = run(True)
    except Exception:
        # Compatibility fallback: if this jax build rejects Buffered(1),
        # default double-buffering is functionally identical (2x weight VMEM).
        out2d = run(False)

    # Slice away lane padding and restore the trailing singleton dim.
    return out2d[:, :pred_len].reshape(B, pred_len, 1)


def init_params(key, seq_len, pred_len):
    """torch.nn.Linear-style uniform(+-1/sqrt(fan_in)) init, f32, stored
    transposed to (in_features, out_features)."""
    k1, k2, k3, k4 = jax.random.split(key, 4)
    lim1 = 1.0 / (seq_len ** 0.5)
    lim2 = 1.0 / (EMBED_DIM ** 0.5)
    w1 = jax.random.uniform(k1, (seq_len, EMBED_DIM), jnp.float32, -lim1, lim1)
    b1 = jax.random.uniform(k2, (EMBED_DIM,), jnp.float32, -lim1, lim1)
    w2 = jax.random.uniform(k3, (EMBED_DIM, pred_len), jnp.float32, -lim2, lim2)
    b2 = jax.random.uniform(k4, (pred_len,), jnp.float32, -lim2, lim2)
    return w1, b1, w2, b2


if __name__ == "__main__":
    B, seq_len, pred_len = 2, 8, 4

    key = jax.random.PRNGKey(0)
    kx, kp = jax.random.split(key)
    batch_x = jax.random.normal(kx, (B, seq_len, 1), jnp.float32)
    w1, b1, w2, b2 = init_params(kp, seq_len, pred_len)

    params = prepare_params(w1, b1, w2, b2)        # one-time pad + bf16 cast
    out = jax.block_until_ready(custom_linear_forward(batch_x, params))

    # Pure-JAX reference mirroring the kernel's mixed precision
    # (bf16 MXU operands + bf16 epilogue, f32 accumulation), unpadded weights.
    x2d = batch_x.reshape(B, seq_len).astype(jnp.bfloat16)
    h = jnp.dot(x2d, w1.astype(jnp.bfloat16), preferred_element_type=jnp.float32)
    h = jnp.maximum(h.astype(jnp.bfloat16) + b1.astype(jnp.bfloat16), 0.0)
    ref = jnp.dot(h, w2.astype(jnp.bfloat16),
                  preferred_element_type=jnp.float32) + b2
    ref = ref.reshape(B, pred_len, 1)

    assert out.shape == (B, pred_len, 1)
    assert jnp.allclose(out, ref, atol=1e-2, rtol=1e-2), (
        float(jnp.max(jnp.abs(out - ref))))

    print("KERNEL_OK")
</pallas_src>

<mosaic_0001>
module attributes {stable_mosaic.version = 11 : i64} {
  func.func @_mlp_kernel(%arg0: i32, %arg1: memref<8x8xf32, #tpu.memory_space<vmem>>, %arg2: memref<8x1024xbf16, #tpu.memory_space<vmem>>, %arg3: memref<1x1024xbf16, #tpu.memory_space<vmem>>, %arg4: memref<1024x128xbf16, #tpu.memory_space<vmem>>, %arg5: memref<1x128xf32, #tpu.memory_space<vmem>>, %arg6: memref<8x128xf32, #tpu.memory_space<vmem>>) attributes {dimension_semantics = [#tpu.dimension_semantics<parallel>], iteration_bounds = array<i64: 1>, scalar_prefetch = 0 : i64, scratch_operands = 0 : i64, tpu.core_type = #tpu.core_type<tc>, window_params = [{transform_indices = @transform_0, window_bounds = array<i64: 8, 8>}, {pipeline_mode = #tpu.pipeline_mode<synchronous>, transform_indices = @transform_1, window_bounds = array<i64: 8, 1024>}, {pipeline_mode = #tpu.pipeline_mode<synchronous>, transform_indices = @transform_2, window_bounds = array<i64: 1, 1024>}, {pipeline_mode = #tpu.pipeline_mode<synchronous>, transform_indices = @transform_3, window_bounds = array<i64: 1024, 128>}, {pipeline_mode = #tpu.pipeline_mode<synchronous>, transform_indices = @transform_4, window_bounds = array<i64: 1, 128>}, {transform_indices = @transform_5, window_bounds = array<i64: 8, 128>}]} {
    %c0 = arith.constant 0 : index
    %c0_0 = arith.constant 0 : index
    %0 = vector.load %arg1[%c0, %c0_0] : memref<8x8xf32, #tpu.memory_space<vmem>>, vector<8x8xf32>
    %1 = arith.truncf %0 : vector<8x8xf32> to vector<8x8xbf16>
    %c0_1 = arith.constant 0 : index
    %c0_2 = arith.constant 0 : index
    %2 = vector.load %arg2[%c0_1, %c0_2] : memref<8x1024xbf16, #tpu.memory_space<vmem>>, vector<8x1024xbf16>
    %cst = arith.constant dense<0.000000e+00> : vector<8x1024xf32>
    %3 = tpu.matmul %1, %2, %cst {dimension_numbers = #tpu.dot_dimension_numbers<[1], [0], [0], [1], [0, 0, 1, 1], [], []>} : vector<8x8xbf16>, vector<8x1024xbf16>, vector<8x1024xf32> -> vector<8x1024xf32>
    %4 = arith.truncf %3 : vector<8x1024xf32> to vector<8x1024xbf16>
    %c0_3 = arith.constant 0 : index
    %c0_4 = arith.constant 0 : index
    %5 = vector.load %arg3[%c0_3, %c0_4] : memref<1x1024xbf16, #tpu.memory_space<vmem>>, vector<1x1024xbf16>
    %6 = vector.broadcast %5 : vector<1x1024xbf16> to vector<8x1024xbf16>
    %7 = arith.addf %4, %6 : vector<8x1024xbf16>
    %cst_5 = arith.constant 0.000000e+00 : bf16
    %8 = vector.broadcast %cst_5 : bf16 to vector<8x1024xbf16>
    %9 = arith.maximumf %7, %8 : vector<8x1024xbf16>
    %c0_6 = arith.constant 0 : index
    %c0_7 = arith.constant 0 : index
    %10 = vector.load %arg4[%c0_6, %c0_7] : memref<1024x128xbf16, #tpu.memory_space<vmem>>, vector<1024x128xbf16>
    %cst_8 = arith.constant dense<0.000000e+00> : vector<8x128xf32>
    %11 = tpu.matmul %9, %10, %cst_8 {dimension_numbers = #tpu.dot_dimension_numbers<[1], [0], [0], [1], [0, 0, 1, 1], [], []>} : vector<8x1024xbf16>, vector<1024x128xbf16>, vector<8x128xf32> -> vector<8x128xf32>
    %c0_9 = arith.constant 0 : index
    %c0_10 = arith.constant 0 : index
    %12 = vector.load %arg5[%c0_9, %c0_10] : memref<1x128xf32, #tpu.memory_space<vmem>>, vector<1x128xf32>
    %13 = vector.broadcast %12 : vector<1x128xf32> to vector<8x128xf32>
    %14 = arith.addf %11, %13 : vector<8x128xf32>
    %c0_11 = arith.constant 0 : index
    %c0_12 = arith.constant 0 : index
    %15 = vector.load %arg6[%c0_11, %c0_12] : memref<8x128xf32, #tpu.memory_space<vmem>>, vector<8x128xf32>
    tpu.vector_store %arg6[%c0_11, %c0_12], %14 {strides = array<i32>} : memref<8x128xf32, #tpu.memory_space<vmem>>, vector<8x128xf32>,
    return
  }
  func.func @transform_0(%arg0: i32) -> (i32, i32) {
    %c0_i32 = arith.constant 0 : i32
    %c0_i32_0 = arith.constant 0 : i32
    return %arg0, %c0_i32 : i32, i32
  }
  func.func @transform_1(%arg0: i32) -> (i32, i32) {
    %c0_i32 = arith.constant 0 : i32
    %c0_i32_0 = arith.constant 0 : i32
    %c0_i32_1 = arith.constant 0 : i32
    return %c0_i32, %c0_i32_0 : i32, i32
  }
  func.func @transform_2(%arg0: i32) -> (i32, i32) {
    %c0_i32 = arith.constant 0 : i32
    %c0_i32_0 = arith.constant 0 : i32
    %c0_i32_1 = arith.constant 0 : i32
    return %c0_i32, %c0_i32_0 : i32, i32
  }
  func.func @transform_3(%arg0: i32) -> (i32, i32) {
    %c0_i32 = arith.constant 0 : i32
    %c0_i32_0 = arith.constant 0 : i32
    %c0_i32_1 = arith.constant 0 : i32
    return %c0_i32, %c0_i32_0 : i32, i32
  }
  func.func @transform_4(%arg0: i32) -> (i32, i32) {
    %c0_i32 = arith.constant 0 : i32
    %c0_i32_0 = arith.constant 0 : i32
    %c0_i32_1 = arith.constant 0 : i32
    return %c0_i32, %c0_i32_0 : i32, i32
  }
  func.func @transform_5(%arg0: i32) -> (i32, i32) {
    %c0_i32 = arith.constant 0 : i32
    %c0_i32_0 = arith.constant 0 : i32
    return %arg0, %c0_i32 : i32, i32
  }
}

module attributes {stable_mosaic.version = 11 : i64} {
  func.func @_mlp_kernel(%arg0: i32, %arg1: memref<8x8xf32, #tpu.memory_space<vmem>>, %arg2: memref<8x1024xbf16, #tpu.memory_space<vmem>>, %arg3: memref<1x1024xbf16, #tpu.memory_space<vmem>>, %arg4: memref<1024x128xbf16, #tpu.memory_space<vmem>>, %arg5: memref<1x128xf32, #tpu.memory_space<vmem>>, %arg6: memref<8x128xf32, #tpu.memory_space<vmem>>) attributes {dimension_semantics = [#tpu.dimension_semantics<parallel>], iteration_bounds = array<i64: 1>, scalar_prefetch = 0 : i64, scratch_operands = 0 : i64, tpu.core_type = #tpu.core_type<tc>, window_params = [{transform_indices = @transform_0, window_bounds = array<i64: 8, 8>}, {pipeline_mode = #tpu.pipeline_mode<synchronous>, transform_indices = @transform_1, window_bounds = array<i64: 8, 1024>}, {pipeline_mode = #tpu.pipeline_mode<synchronous>, transform_indices = @transform_2, window_bounds = array<i64: 1, 1024>}, {pipeline_mode = #tpu.pipeline_mode<synchronous>, transform_indices = @transform_3, window_bounds = array<i64: 1024, 128>}, {pipeline_mode = #tpu.pipeline_mode<synchronous>, transform_indices = @transform_4, window_bounds = array<i64: 1, 128>}, {transform_indices = @transform_5, window_bounds = array<i64: 8, 128>}]} {
    %c0 = arith.constant 0 : index
    %c0_0 = arith.constant 0 : index
    %0 = vector.load %arg1[%c0, %c0_0] : memref<8x8xf32, #tpu.memory_space<vmem>>, vector<8x8xf32>
    %1 = arith.truncf %0 : vector<8x8xf32> to vector<8x8xbf16>
    %c0_1 = arith.constant 0 : index
    %c0_2 = arith.constant 0 : index
    %2 = vector.load %arg2[%c0_1, %c0_2] : memref<8x1024xbf16, #tpu.memory_space<vmem>>, vector<8x1024xbf16>
    %cst = arith.constant dense<0.000000e+00> : vector<8x1024xf32>
    %3 = tpu.matmul %1, %2, %cst {dimension_numbers = #tpu.dot_dimension_numbers<[1], [0], [0], [1], [0, 0, 1, 1], [], []>} : vector<8x8xbf16>, vector<8x1024xbf16>, vector<8x1024xf32> -> vector<8x1024xf32>
    %4 = arith.truncf %3 : vector<8x1024xf32> to vector<8x1024xbf16>
    %c0_3 = arith.constant 0 : index
    %c0_4 = arith.constant 0 : index
    %5 = vector.load %arg3[%c0_3, %c0_4] : memref<1x1024xbf16, #tpu.memory_space<vmem>>, vector<1x1024xbf16>
    %6 = vector.broadcast %5 : vector<1x1024xbf16> to vector<8x1024xbf16>
    %7 = arith.addf %4, %6 : vector<8x1024xbf16>
    %cst_5 = arith.constant 0.000000e+00 : bf16
    %8 = vector.broadcast %cst_5 : bf16 to vector<8x1024xbf16>
    %9 = arith.maximumf %7, %8 : vector<8x1024xbf16>
    %c0_6 = arith.constant 0 : index
    %c0_7 = arith.constant 0 : index
    %10 = vector.load %arg4[%c0_6, %c0_7] : memref<1024x128xbf16, #tpu.memory_space<vmem>>, vector<1024x128xbf16>
    %cst_8 = arith.constant dense<0.000000e+00> : vector<8x128xf32>
    %11 = tpu.matmul %9, %10, %cst_8 {dimension_numbers = #tpu.dot_dimension_numbers<[1], [0], [0], [1], [0, 0, 1, 1], [], []>} : vector<8x1024xbf16>, vector<1024x128xbf16>, vector<8x128xf32> -> vector<8x128xf32>
    %c0_9 = arith.constant 0 : index
    %c0_10 = arith.constant 0 : index
    %12 = vector.load %arg5[%c0_9, %c0_10] : memref<1x128xf32, #tpu.memory_space<vmem>>, vector<1x128xf32>
    %13 = vector.broadcast %12 : vector<1x128xf32> to vector<8x128xf32>
    %14 = arith.addf %11, %13 : vector<8x128xf32>
    %c0_11 = arith.constant 0 : index
    %c0_12 = arith.constant 0 : index
    %15 = vector.load %arg6[%c0_11, %c0_12] : memref<8x128xf32, #tpu.memory_space<vmem>>, vector<8x128xf32>
    tpu.vector_store %arg6[%c0_11, %c0_12], %14 {strides = array<i32>} : memref<8x128xf32, #tpu.memory_space<vmem>>, vector<8x128xf32>,
    return
  }
  func.func @transform_0(%arg0: i32) -> (i32, i32) {
    %c0_i32 = arith.constant 0 : i32
    %c0_i32_0 = arith.constant 0 : i32
    return %arg0, %c0_i32 : i32, i32
  }
  func.func @transform_1(%arg0: i32) -> (i32, i32) {
    %c0_i32 = arith.constant 0 : i32
    %c0_i32_0 = arith.constant 0 : i32
    %c0_i32_1 = arith.constant 0 : i32
    return %c0_i32, %c0_i32_0 : i32, i32
  }
  func.func @transform_2(%arg0: i32) -> (i32, i32) {
    %c0_i32 = arith.constant 0 : i32
    %c0_i32_0 = arith.constant 0 : i32
    %c0_i32_1 = arith.constant 0 : i32
    return %c0_i32, %c0_i32_0 : i32, i32
  }
  func.func @transform_3(%arg0: i32) -> (i32, i32) {
    %c0_i32 = arith.constant 0 : i32
    %c0_i32_0 = arith.constant 0 : i32
    %c0_i32_1 = arith.constant 0 : i32
    return %c0_i32, %c0_i32_0 : i32, i32
  }
  func.func @transform_4(%arg0: i32) -> (i32, i32) {
    %c0_i32 = arith.constant 0 : i32
    %c0_i32_0 = arith.constant 0 : i32
    %c0_i32_1 = arith.constant 0 : i32
    return %c0_i32, %c0_i32_0 : i32, i32
  }
  func.func @transform_5(%arg0: i32) -> (i32, i32) {
    %c0_i32 = arith.constant 0 : i32
    %c0_i32_0 = arith.constant 0 : i32
    return %arg0, %c0_i32 : i32, i32
  }
}

</mosaic_0001>

<llo_original>
// kernel: tpu_custom_call.1
$region0: #{tpu_custom_call.1}
  #allocation0 [shape = 'u32[]', space=smem, size = 0x4, offset = 0x4, fixed_abs, tag = 'smem constant byte address 0x4 - core index']
  #allocation1 [shape = 'u32[144,128]{1,0:T(1,128)}', space=vmem, size = 0x12000, scoped, tag = 'internal scratch']
  %s0 = inlined_call_operand.hbm [shape: f32[2,8], index: 0, kind: input, shape index: {}]
  %s1 = inlined_call_operand.hbm [shape: bf16[8,1024], index: 1, kind: input, shape index: {}]
  %s2 = inlined_call_operand.hbm [shape: bf16[1,1024], index: 2, kind: input, shape index: {}]
  %s3 = inlined_call_operand.hbm [shape: bf16[1024,128], index: 3, kind: input, shape index: {}]
  %s4 = inlined_call_operand.vmem [shape: f32[1,128], index: 4, kind: input, shape index: {}]
  %s5 = inlined_call_operand.hbm [shape: f32[2,128], index: 5, kind: output, shape index: {}]
  %s6 = sld [smem:[#allocation0]]
  $region46: #{tpu_custom_call.1} parent=0
    _
  %s8 = ssub.s32 1, %s6
  %s9 = scalar_select 0, %s8, %s6
  $region1: #{tpu_custom_call.1} parent=0
    #allocation2 [shape = 'u8[4096]{0}', space=vmem, size = 0x1000, scoped, tag = 'input window, operand 0, single buffered']
    #allocation3 [shape = 's32[1]{0}', space=sflag, size = 0x4, scoped, tag = 'scoped memory for tpu_custom_call.1']
    #allocation4 [shape = 's32[1]{0}', space=sflag, size = 0x4, scoped, tag = 'scoped memory for tpu_custom_call.1']
    #allocation5 [shape = 'u8[16384]{0}', space=vmem, size = 0x4000, scoped, tag = 'input window, operand 1, single buffered']
    #allocation6 [shape = 's32[1]{0}', space=sflag, size = 0x4, scoped, tag = 'scoped memory for tpu_custom_call.1']
    #allocation7 [shape = 'u8[4096]{0}', space=vmem, size = 0x1000, scoped, tag = 'input window, operand 2, single buffered']
    #allocation8 [shape = 'u8[262144]{0}', space=vmem, size = 0x40000, scoped, tag = 'input window, operand 3, single buffered']
    #allocation9 [shape = 's32[1]{0}', space=sflag, size = 0x4, scoped, tag = 'scoped memory for tpu_custom_call.1']
    #allocation10 [shape = 'u8[4096]{0}', space=vmem, size = 0x1000, scoped, tag = 'output window, operand 0, single buffered']
    %10 = vsyncpa [#allocation3], 0
    %11 = vsyncpa [#allocation6], 0
    %12 = vsyncpa [#allocation9], 0
    %13 = vsyncpa [#allocation4], 0
    // Predicated region
    $region2: #{tpu_custom_call.1} parent=1 // pred_check
      _
    $region3: #{tpu_custom_call.1} parent=1 // pred_check_branch
      %15 = sbr.rel (0) target = $region5
    $region4: #{tpu_custom_call.1} parent=1 // pred_region
      %s17 = ssub.s32 128, 32
      %18 = vsyncadd [#allocation3], %s17
      %s19 = sshll.u32 [#allocation2], 4
      %s20 = int_to_ptr.vmem [resolvable:$true] %s19
      %25 = dma.hbm_to_vmem [thread:$0]  %s0, 32, %s20, [#allocation3], 32, 32, 2
    $region5: #{tpu_custom_call.1} parent=1 // pred_fallthru
      _
    // Predicated region
    $region6: #{tpu_custom_call.1} parent=1 // pred_check
      _
    $region7: #{tpu_custom_call.1} parent=1 // pred_check_branch
      %27 = sbr.rel (0) target = $region9
    $region8: #{tpu_custom_call.1} parent=1 // pred_region
      %s29 = ssub.s32 512, 512
      %30 = vsyncadd [#allocation6], %s29
      %s32 = sshll.u32 [#allocation5], 4
      %s33 = int_to_ptr.vmem [resolvable:$true] %s32
      %35 = dma.hbm_to_vmem [thread:$0]  %s1, 512, %s33, [#allocation6]
    $region9: #{tpu_custom_call.1} parent=1 // pred_fallthru
      _
    // Predicated region
    $region10: #{tpu_custom_call.1} parent=1 // pred_check
      _
    $region11: #{tpu_custom_call.1} parent=1 // pred_check_branch
      %37 = sbr.rel (0) target = $region13
    $region12: #{tpu_custom_call.1} parent=1 // pred_region
      %s39 = ssub.s32 128, 128
      %40 = vsyncadd [#allocation6], %s39
      %s42 = sshll.u32 [#allocation7], 4
      %s43 = int_to_ptr.vmem [resolvable:$true] %s42
      %45 = dma.hbm_to_vmem [thread:$0]  %s2, 128, %s43, [#allocation6]
    $region13: #{tpu_custom_call.1} parent=1 // pred_fallthru
      _
    // Predicated region
    $region14: #{tpu_custom_call.1} parent=1 // pred_check
      _
    $region15: #{tpu_custom_call.1} parent=1 // pred_check_branch
      %47 = sbr.rel (0) target = $region17
    $region16: #{tpu_custom_call.1} parent=1 // pred_region
      %s49 = ssub.s32 8192, 8192
      %50 = vsyncadd [#allocation9], %s49
      %s51 = sshll.u32 [#allocation8], 4
      %s52 = int_to_ptr.vmem [resolvable:$true] %s51
      %57 = dma.hbm_to_vmem [thread:$0]  %s3, 8192, %s52, [#allocation9], 64, 64, 4
    $region17: #{tpu_custom_call.1} parent=1 // pred_fallthru
      _
    // Predicated region
    $region18: #{tpu_custom_call.1} parent=1 // pred_check
      _
    $region19: #{tpu_custom_call.1} parent=1 // pred_check_branch
      %59 = sbr.rel (0) target = $region21
    $region20: #{tpu_custom_call.1} parent=1 // pred_region
      _
    $region21: #{tpu_custom_call.1} parent=1 // pred_fallthru
      _
    // Predicated region
    $region22: #{tpu_custom_call.1} parent=1 // pred_check
      _
    $region23: #{tpu_custom_call.1} parent=1 // pred_check_branch
      %61 = sbr.rel (0) target = $region25
    $region24: #{tpu_custom_call.1} parent=1 // pred_region
      %62 = dma.done [#allocation3], 128
    $region25: #{tpu_custom_call.1} parent=1 // pred_fallthru
      _
    // Predicated region
    $region26: #{tpu_custom_call.1} parent=1 // pred_check
      _
    $region27: #{tpu_custom_call.1} parent=1 // pred_check_branch
      %64 = sbr.rel (0) target = $region29
    $region28: #{tpu_custom_call.1} parent=1 // pred_region
      %65 = dma.done [#allocation6], 512
    $region29: #{tpu_custom_call.1} parent=1 // pred_fallthru
      _
    // Predicated region
    $region30: #{tpu_custom_call.1} parent=1 // pred_check
      _
    $region31: #{tpu_custom_call.1} parent=1 // pred_check_branch
      %67 = sbr.rel (0) target = $region33
    $region32: #{tpu_custom_call.1} parent=1 // pred_region
      %68 = dma.done [#allocation6], 128
    $region33: #{tpu_custom_call.1} parent=1 // pred_fallthru
      _
    // Predicated region
    $region34: #{tpu_custom_call.1} parent=1 // pred_check
      _
    $region35: #{tpu_custom_call.1} parent=1 // pred_check_branch
      %70 = sbr.rel (0) target = $region37
    $region36: #{tpu_custom_call.1} parent=1 // pred_region
      %71 = dma.done [#allocation9], 8192
    $region37: #{tpu_custom_call.1} parent=1 // pred_fallthru
      _
    %v73 = vld [vmem:[#allocation2] sm:$0xff]
    %v74 = vpack.c.bf16 %v73, %v73
    %v75 = vld [vmem:[#allocation5] sm:$0xff]
    %v76 = vld [vmem:[#allocation5 + $0x8] sm:$0xff]
    %v77 = vld [vmem:[#allocation5 + $0x10] sm:$0xff]
    %v78 = vld [vmem:[#allocation5 + $0x18] sm:$0xff]
    %v83 = vunpack.c.l.b16 %v75
    %v84 = vunpack.c.h.b16 %v75
    %v85 = vunpack.c.l.b16 %v76
    %v86 = vunpack.c.h.b16 %v76
    %v87 = vunpack.c.l.b16 %v77
    %v88 = vunpack.c.h.b16 %v77
    %v89 = vunpack.c.l.b16 %v78
    %v90 = vunpack.c.h.b16 %v78
    %v91 = vpack.c.b16 %v83, %v83
    %v92 = vpack.c.b16 %v84, %v84
    %v93 = vpack.c.b16 %v85, %v85
    %v94 = vpack.c.b16 %v86, %v86
    %v95 = vpack.c.b16 %v87, %v87
    %v96 = vpack.c.b16 %v88, %v88
    %v97 = vpack.c.b16 %v89, %v89
    %v98 = vpack.c.b16 %v90, %v90
    %vm99 = vcmask 64512
    %v101 = vsel %vm99, %v74, 0
    %vm103 = vcmask 1043456
    %v105 = vsel %vm103, %v91, 0
    %v108 = vsel %vm103, %v92, 0
    %v111 = vsel %vm103, %v93, 0
    %v114 = vsel %vm103, %v94, 0
    %v117 = vsel %vm103, %v95, 0
    %v120 = vsel %vm103, %v96, 0
    %v123 = vsel %vm103, %v97, 0
    %v126 = vsel %vm103, %v98, 0
    %128 = vmatprep.subr.bf16.mxu0 0
    %129 = vmatpush1.bf16.msra.mxu0 0
    %130 = vmatprep.subr.bf16.mxu0 0
    %131 = vmatpush1.bf16.msra.mxu0 0
    %132 = vmatprep.subr.bf16.mxu0 0
    %133 = vmatpush1.bf16.msra.mxu0 0
    %134 = vmatprep.subr.bf16.mxu0 0
    %135 = vmatpush1.bf16.msra.mxu0 0
    %136 = vmatprep.subr.bf16.mxu0 0
    %137 = vmatpush1.bf16.msra.mxu0 0
    %138 = vmatprep.subr.bf16.mxu0 0
    %139 = vmatpush1.bf16.msra.mxu0 0
    %140 = vmatprep.subr.bf16.mxu0 0
    %141 = vmatpush1.bf16.msra.mxu0 0
    %142 = vmatprep.subr.bf16.mxu0 %v108
    %143 = vmatpush1.bf16.msra.mxu0 %v105
    %144 = vmatprep.subr.bf16.mxu0 0
    %145 = vmatpush2.bf16.msra.mxu0 0
    %146 = vmatprep.subr.bf16.mxu0 0
    %147 = vmatpush2.bf16.msra.mxu0 0
    %148 = vmatprep.subr.bf16.mxu0 0
    %149 = vmatpush2.bf16.msra.mxu0 0
    %150 = vmatprep.subr.bf16.mxu0 0
    %151 = vmatpush2.bf16.msra.mxu0 0
    %152 = vmatprep.subr.bf16.mxu0 0
    %153 = vmatpush2.bf16.msra.mxu0 0
    %154 = vmatprep.subr.bf16.mxu0 0
    %155 = vmatpush2.bf16.msra.mxu0 0
    %156 = vmatprep.subr.bf16.mxu0 0
    %157 = vmatpush2.bf16.msra.mxu0 0
    %158 = vmatprep.subr.bf16.mxu0 0
    %159 = vmatpush2.bf16.msra.mxu0 0
    %160 = vmatprep.mubr.bf16.mxu0 0
    %161 = vmatmul.mubr.bf16.gmra.mxu0 %v101
    %v162 = vpop.f32.mrf.mxu0
    %v163 = vadd.f32 0.0, %v162
    %v164 = vpop.f32.mrf.mxu0
    %v165 = vadd.f32 0.0, %v164
    %v166 = vpop.f32.mrf.mxu0
    %v167 = vpop.f32.mrf.mxu0
    %168 = vdwg.mxu0
    %169 = vmatprep.subr.bf16.mxu0 0
    %170 = vmatpush1.bf16.msra.mxu0 0
    %171 = vmatprep.subr.bf16.mxu0 0
    %172 = vmatpush1.bf16.msra.mxu0 0
    %173 = vmatprep.subr.bf16.mxu0 0
    %174 = vmatpush1.bf16.msra.mxu0 0
    %175 = vmatprep.subr.bf16.mxu0 0
    %176 = vmatpush1.bf16.msra.mxu0 0
    %177 = vmatprep.subr.bf16.mxu0 0
    %178 = vmatpush1.bf16.msra.mxu0 0
    %179 = vmatprep.subr.bf16.mxu0 0
    %180 = vmatpush1.bf16.msra.mxu0 0
    %181 = vmatprep.subr.bf16.mxu0 0
    %182 = vmatpush1.bf16.msra.mxu0 0
    %183 = vmatprep.subr.bf16.mxu0 %v114
    %184 = vmatpush1.bf16.msra.mxu0 %v111
    %185 = vmatprep.subr.bf16.mxu0 0
    %186 = vmatpush2.bf16.msra.mxu0 0
    %187 = vmatprep.subr.bf16.mxu0 0
    %188 = vmatpush2.bf16.msra.mxu0 0
    %189 = vmatprep.subr.bf16.mxu0 0
    %190 = vmatpush2.bf16.msra.mxu0 0
    %191 = vmatprep.subr.bf16.mxu0 0
    %192 = vmatpush2.bf16.msra.mxu0 0
    %193 = vmatprep.subr.bf16.mxu0 0
    %194 = vmatpush2.bf16.msra.mxu0 0
    %195 = vmatprep.subr.bf16.mxu0 0
    %196 = vmatpush2.bf16.msra.mxu0 0
    %197 = vmatprep.subr.bf16.mxu0 0
    %198 = vmatpush2.bf16.msra.mxu0 0
    %199 = vmatprep.subr.bf16.mxu0 0
    %200 = vmatpush2.bf16.msra.mxu0 0
    %201 = vmatprep.mubr.bf16.mxu0 0
    %202 = vmatmul.mubr.bf16.gmra.mxu0 %v101
    %v203 = vpop.f32.mrf.mxu0
    %v204 = vadd.f32 0.0, %v203
    %v205 = vpop.f32.mrf.mxu0
    %v206 = vadd.f32 0.0, %v205
    %v207 = vpop.f32.mrf.mxu0
    %v208 = vpop.f32.mrf.mxu0
    %209 = vdwg.mxu0
    %210 = vmatprep.subr.bf16.mxu0 0
    %211 = vmatpush1.bf16.msra.mxu0 0
    %212 = vmatprep.subr.bf16.mxu0 0
    %213 = vmatpush1.bf16.msra.mxu0 0
    %214 = vmatprep.subr.bf16.mxu0 0
    %215 = vmatpush1.bf16.msra.mxu0 0
    %216 = vmatprep.subr.bf16.mxu0 0
    %217 = vmatpush1.bf16.msra.mxu0 0
    %218 = vmatprep.subr.bf16.mxu0 0
    %219 = vmatpush1.bf16.msra.mxu0 0
    %220 = vmatprep.subr.bf16.mxu0 0
    %221 = vmatpush1.bf16.msra.mxu0 0
    %222 = vmatprep.subr.bf16.mxu0 0
    %223 = vmatpush1.bf16.msra.mxu0 0
    %224 = vmatprep.subr.bf16.mxu0 %v120
    %225 = vmatpush1.bf16.msra.mxu0 %v117
    %226 = vmatprep.subr.bf16.mxu0 0
    %227 = vmatpush2.bf16.msra.mxu0 0
    %228 = vmatprep.subr.bf16.mxu0 0
    %229 = vmatpush2.bf16.msra.mxu0 0
    %230 = vmatprep.subr.bf16.mxu0 0
    %231 = vmatpush2.bf16.msra.mxu0 0
    %232 = vmatprep.subr.bf16.mxu0 0
    %233 = vmatpush2.bf16.msra.mxu0 0
    %234 = vmatprep.subr.bf16.mxu0 0
    %235 = vmatpush2.bf16.msra.mxu0 0
    %236 = vmatprep.subr.bf16.mxu0 0
    %237 = vmatpush2.bf16.msra.mxu0 0
    %238 = vmatprep.subr.bf16.mxu0 0
    %239 = vmatpush2.bf16.msra.mxu0 0
    %240 = vmatprep.subr.bf16.mxu0 0
    %241 = vmatpush2.bf16.msra.mxu0 0
    %242 = vmatprep.mubr.bf16.mxu0 0
    %243 = vmatmul.mubr.bf16.gmra.mxu0 %v101
    %v244 = vpop.f32.mrf.mxu0
    %v245 = vadd.f32 0.0, %v244
    %v246 = vpop.f32.mrf.mxu0
    %v247 = vadd.f32 0.0, %v246
    %v248 = vpop.f32.mrf.mxu0
    %v249 = vpop.f32.mrf.mxu0
    %250 = vdwg.mxu0
    %251 = vmatprep.subr.bf16.mxu0 0
    %252 = vmatpush1.bf16.msra.mxu0 0
    %253 = vmatprep.subr.bf16.mxu0 0
    %254 = vmatpush1.bf16.msra.mxu0 0
    %255 = vmatprep.subr.bf16.mxu0 0
    %256 = vmatpush1.bf16.msra.mxu0 0
    %257 = vmatprep.subr.bf16.mxu0 0
    %258 = vmatpush1.bf16.msra.mxu0 0
    %259 = vmatprep.subr.bf16.mxu0 0
    %260 = vmatpush1.bf16.msra.mxu0 0
    %261 = vmatprep.subr.bf16.mxu0 0
    %262 = vmatpush1.bf16.msra.mxu0 0
    %263 = vmatprep.subr.bf16.mxu0 0
    %264 = vmatpush1.bf16.msra.mxu0 0
    %265 = vmatprep.subr.bf16.mxu0 %v126
    %266 = vmatpush1.bf16.msra.mxu0 %v123
    %267 = vmatprep.subr.bf16.mxu0 0
    %268 = vmatpush2.bf16.msra.mxu0 0
    %269 = vmatprep.subr.bf16.mxu0 0
    %270 = vmatpush2.bf16.msra.mxu0 0
    %271 = vmatprep.subr.bf16.mxu0 0
    %272 = vmatpush2.bf16.msra.mxu0 0
    %273 = vmatprep.subr.bf16.mxu0 0
    %274 = vmatpush2.bf16.msra.mxu0 0
    %275 = vmatprep.subr.bf16.mxu0 0
    %276 = vmatpush2.bf16.msra.mxu0 0
    %277 = vmatprep.subr.bf16.mxu0 0
    %278 = vmatpush2.bf16.msra.mxu0 0
    %279 = vmatprep.subr.bf16.mxu0 0
    %280 = vmatpush2.bf16.msra.mxu0 0
    %281 = vmatprep.subr.bf16.mxu0 0
    %282 = vmatpush2.bf16.msra.mxu0 0
    %283 = vmatprep.mubr.bf16.mxu0 0
    %284 = vmatmul.mubr.bf16.gmra.mxu0 %v101
    %v285 = vpop.f32.mrf.mxu0
    %v286 = vadd.f32 0.0, %v285
    %v287 = vpop.f32.mrf.mxu0
    %v288 = vadd.f32 0.0, %v287
    %v289 = vpop.f32.mrf.mxu0
    %v290 = vpop.f32.mrf.mxu0
    %291 = vdwg.mxu0
    %v292 = vpack.c.bf16 %v163, %v163
    %v293 = vpack.c.bf16 %v165, %v165
    %v294 = vpack.c.bf16 %v204, %v204
    %v295 = vpack.c.bf16 %v206, %v206
    %v296 = vpack.c.bf16 %v245, %v245
    %v297 = vpack.c.bf16 %v247, %v247
    %v298 = vpack.c.bf16 %v286, %v286
    %v299 = vpack.c.bf16 %v288, %v288
    %v300 = vld [vmem:[#allocation7] sm:$0xff]
    %v302 = vcombine.high %v300, %v300
    %v304 = vunpack.c.l.s4 1966171168
    %v305 = vunpack.c.0.s8 %v304
    %v306 = vlaneseq
    %v307 = vshrl.u32 %v306, 7
    %v308 = vsub.s32 %v305, %v307
    %v309 = vrot.slane %v300, %v308
    %v311 = vunpack.c.l.s4 1966171168
    %v312 = vunpack.c.0.s8 %v311
    %v313 = vlaneseq
    %v314 = vshrl.u32 %v313, 7
    %v315 = vsub.s32 %v312, %v314
    %v316 = vrot.slane %v302, %v315
    %v317 = vcombine.high %v309, %v309
    %v318 = vcombine.high %v316, %v316
    %v320 = vunpack.c.l.s4 1966171168
    %v321 = vunpack.c.0.s8 %v320
    %v322 = vlaneseq
    %v323 = vshrl.u32 %v322, 7
    %v324 = vsub.s32 %v321, %v323
    %v325 = vrot.slane %v309, %v324
    %v327 = vunpack.c.l.s4 1966171168
    %v328 = vunpack.c.0.s8 %v327
    %v329 = vlaneseq
    %v330 = vshrl.u32 %v329, 7
    %v331 = vsub.s32 %v328, %v330
    %v332 = vrot.slane %v316, %v331
    %v334 = vunpack.c.l.s4 1966171168
    %v335 = vunpack.c.0.s8 %v334
    %v336 = vlaneseq
    %v337 = vshrl.u32 %v336, 7
    %v338 = vsub.s32 %v335, %v337
    %v339 = vrot.slane %v317, %v338
    %v341 = vunpack.c.l.s4 1966171168
    %v342 = vunpack.c.0.s8 %v341
    %v343 = vlaneseq
    %v344 = vshrl.u32 %v343, 7
    %v345 = vsub.s32 %v342, %v344
    %v346 = vrot.slane %v318, %v345
    %v347 = vcombine.high %v325, %v325
    %v348 = vcombine.high %v332, %v332
    %v349 = vcombine.high %v339, %v339
    %v350 = vcombine.high %v346, %v346
    %v352 = vpack.i.b16 %v325, %v325
    %v354 = vlaneseq
    %v355 = vshrl.u32 %v354, 7
    %v356 = vsub.s32 0, %v355
    %v357 = vrot.slane %v352, %v356
    %v359 = vpack.i.b16 %v339, %v339
    %v361 = vlaneseq
    %v362 = vshrl.u32 %v361, 7
    %v363 = vsub.s32 0, %v362
    %v364 = vrot.slane %v359, %v363
    %v366 = vpack.i.b16 %v347, %v347
    %v368 = vlaneseq
    %v369 = vshrl.u32 %v368, 7
    %v370 = vsub.s32 0, %v369
    %v371 = vrot.slane %v366, %v370
    %v373 = vpack.i.b16 %v349, %v349
    %v375 = vlaneseq
    %v376 = vshrl.u32 %v375, 7
    %v377 = vsub.s32 0, %v376
    %v378 = vrot.slane %v373, %v377
    %v380 = vpack.i.b16 %v332, %v332
    %v382 = vlaneseq
    %v383 = vshrl.u32 %v382, 7
    %v384 = vsub.s32 0, %v383
    %v385 = vrot.slane %v380, %v384
    %v387 = vpack.i.b16 %v346, %v346
    %v389 = vlaneseq
    %v390 = vshrl.u32 %v389, 7
    %v391 = vsub.s32 0, %v390
    %v392 = vrot.slane %v387, %v391
    %v394 = vpack.i.b16 %v348, %v348
    %v396 = vlaneseq
    %v397 = vshrl.u32 %v396, 7
    %v398 = vsub.s32 0, %v397
    %v399 = vrot.slane %v394, %v398
    %v401 = vpack.i.b16 %v350, %v350
    %v403 = vlaneseq
    %v404 = vshrl.u32 %v403, 7
    %v405 = vsub.s32 0, %v404
    %v406 = vrot.slane %v401, %v405
    %v407 = vadd.bf16 %v292, %v357
    %v408 = vadd.bf16 %v293, %v364
    %v409 = vadd.bf16 %v294, %v371
    %v410 = vadd.bf16 %v295, %v378
    %v411 = vadd.bf16 %v296, %v385
    %v412 = vadd.bf16 %v297, %v392
    %v413 = vadd.bf16 %v298, %v399
    %v414 = vadd.bf16 %v299, %v406
    %v415 = vmax.bf16 %v407, 0
    %v416 = vmax.bf16 %v408, 0
    %v417 = vmax.bf16 %v409, 0
    %v418 = vmax.bf16 %v410, 0
    %v419 = vmax.bf16 %v411, 0
    %v420 = vmax.bf16 %v412, 0
    %v421 = vmax.bf16 %v413, 0
    %v422 = vmax.bf16 %v414, 0
    %v423 = vld [vmem:[#allocation8] sm:$0xf]
    %v424 = vld [vmem:[#allocation8 + $0x4] sm:$0xf]
    %v425 = vld [vmem:[#allocation8 + $0x8] sm:$0xf]
    %v426 = vld [vmem:[#allocation8 + $0xc] sm:$0xf]
    %v427 = vld [vmem:[#allocation8 + $0x10] sm:$0xf]
    %v428 = vld [vmem:[#allocation8 + $0x14] sm:$0xf]
    %v429 = vld [vmem:[#allocation8 + $0x18] sm:$0xf]
    %v430 = vld [vmem:[#allocation8 + $0x1c] sm:$0xf]
    %v431 = vld [vmem:[#allocation8 + $0x20] sm:$0xf]
    %v432 = vld [vmem:[#allocation8 + $0x24] sm:$0xf]
    %v433 = vld [vmem:[#allocation8 + $0x28] sm:$0xf]
    %v434 = vld [vmem:[#allocation8 + $0x2c] sm:$0xf]
    %v435 = vld [vmem:[#allocation8 + $0x30] sm:$0xf]
    %v436 = vld [vmem:[#allocation8 + $0x34] sm:$0xf]
    %v437 = vld [vmem:[#allocation8 + $0x38] sm:$0xf]
    %v438 = vld [vmem:[#allocation8 + $0x3c] sm:$0xf]
    %v439 = vld [vmem:[#allocation8 + $0x40] sm:$0xf]
    %v440 = vld [vmem:[#allocation8 + $0x44] sm:$0xf]
    %v441 = vld [vmem:[#allocation8 + $0x48] sm:$0xf]
    %v442 = vld [vmem:[#allocation8 + $0x4c] sm:$0xf]
    %v443 = vld [vmem:[#allocation8 + $0x50] sm:$0xf]
    %v444 = vld [vmem:[#allocation8 + $0x54] sm:$0xf]
    %v445 = vld [vmem:[#allocation8 + $0x58] sm:$0xf]
    %v446 = vld [vmem:[#allocation8 + $0x5c] sm:$0xf]
    %v447 = vld [vmem:[#allocation8 + $0x60] sm:$0xf]
    %v448 = vld [vmem:[#allocation8 + $0x64] sm:$0xf]
    %v449 = vld [vmem:[#allocation8 + $0x68] sm:$0xf]
    %v450 = vld [vmem:[#allocation8 + $0x6c] sm:$0xf]
    %v451 = vld [vmem:[#allocation8 + $0x70] sm:$0xf]
    %v452 = vld [vmem:[#allocation8 + $0x74] sm:$0xf]
    %v453 = vld [vmem:[#allocation8 + $0x78] sm:$0xf]
    %v454 = vld [vmem:[#allocation8 + $0x7c] sm:$0xf]
    %v455 = vld [vmem:[#allocation8 + $0x80] sm:$0xf]
    %v456 = vld [vmem:[#allocation8 + $0x84] sm:$0xf]
    %v457 = vld [vmem:[#allocation8 + $0x88] sm:$0xf]
    %v458 = vld [vmem:[#allocation8 + $0x8c] sm:$0xf]
    %v459 = vld [vmem:[#allocation8 + $0x90] sm:$0xf]
    %v460 = vld [vmem:[#allocation8 + $0x94] sm:$0xf]
    %v461 = vld [vmem:[#allocation8 + $0x98] sm:$0xf]
    %v462 = vld [vmem:[#allocation8 + $0x9c] sm:$0xf]
    %v463 = vld [vmem:[#allocation8 + $0xa0] sm:$0xf]
    %v464 = vld [vmem:[#allocation8 + $0xa4] sm:$0xf]
    %v465 = vld [vmem:[#allocation8 + $0xa8] sm:$0xf]
    %v466 = vld [vmem:[#allocation8 + $0xac] sm:$0xf]
    %v467 = vld [vmem:[#allocation8 + $0xb0] sm:$0xf]
    %v468 = vld [vmem:[#allocation8 + $0xb4] sm:$0xf]
    %v469 = vld [vmem:[#allocation8 + $0xb8] sm:$0xf]
    %v470 = vld [vmem:[#allocation8 + $0xbc] sm:$0xf]
    %v471 = vld [vmem:[#allocation8 + $0xc0] sm:$0xf]
    %v472 = vld [vmem:[#allocation8 + $0xc4] sm:$0xf]
    %v473 = vld [vmem:[#allocation8 + $0xc8] sm:$0xf]
    %v474 = vld [vmem:[#allocation8 + $0xcc] sm:$0xf]
    %v475 = vld [vmem:[#allocation8 + $0xd0] sm:$0xf]
    %v476 = vld [vmem:[#allocation8 + $0xd4] sm:$0xf]
    %v477 = vld [vmem:[#allocation8 + $0xd8] sm:$0xf]
    %v478 = vld [vmem:[#allocation8 + $0xdc] sm:$0xf]
    %v479 = vld [vmem:[#allocation8 + $0xe0] sm:$0xf]
    %v480 = vld [vmem:[#allocation8 + $0xe4] sm:$0xf]
    %v481 = vld [vmem:[#allocation8 + $0xe8] sm:$0xf]
    %v482 = vld [vmem:[#allocation8 + $0xec] sm:$0xf]
    %v483 = vld [vmem:[#allocation8 + $0xf0] sm:$0xf]
    %v484 = vld [vmem:[#allocation8 + $0xf4] sm:$0xf]
    %v485 = vld [vmem:[#allocation8 + $0xf8] sm:$0xf]
    %v486 = vld [vmem:[#allocation8 + $0xfc] sm:$0xf]
    %v487 = vld [vmem:[#allocation8 + $0x100] sm:$0xf]
    %v488 = vld [vmem:[#allocation8 + $0x104] sm:$0xf]
    %v489 = vld [vmem:[#allocation8 + $0x108] sm:$0xf]
    %v490 = vld [vmem:[#allocation8 + $0x10c] sm:$0xf]
    %v491 = vld [vmem:[#allocation8 + $0x110] sm:$0xf]
    %v492 = vld [vmem:[#allocation8 + $0x114] sm:$0xf]
    %v493 = vld [vmem:[#allocation8 + $0x118] sm:$0xf]
    %v494 = vld [vmem:[#allocation8 + $0x11c] sm:$0xf]
    %v495 = vld [vmem:[#allocation8 + $0x120] sm:$0xf]
    %v496 = vld [vmem:[#allocation8 + $0x124] sm:$0xf]
    %v497 = vld [vmem:[#allocation8 + $0x128] sm:$0xf]
    %v498 = vld [vmem:[#allocation8 + $0x12c] sm:$0xf]
    %v499 = vld [vmem:[#allocation8 + $0x130] sm:$0xf]
    %v500 = vld [vmem:[#allocation8 + $0x134] sm:$0xf]
    %v501 = vld [vmem:[#allocation8 + $0x138] sm:$0xf]
    %v502 = vld [vmem:[#allocation8 + $0x13c] sm:$0xf]
    %v503 = vld [vmem:[#allocation8 + $0x140] sm:$0xf]
    %v504 = vld [vmem:[#allocation8 + $0x144] sm:$0xf]
    %v505 = vld [vmem:[#allocation8 + $0x148] sm:$0xf]
    %v506 = vld [vmem:[#allocation8 + $0x14c] sm:$0xf]
    %v507 = vld [vmem:[#allocation8 + $0x150] sm:$0xf]
    %v508 = vld [vmem:[#allocation8 + $0x154] sm:$0xf]
    %v509 = vld [vmem:[#allocation8 + $0x158] sm:$0xf]
    %v510 = vld [vmem:[#allocation8 + $0x15c] sm:$0xf]
    %v511 = vld [vmem:[#allocation8 + $0x160] sm:$0xf]
    %v512 = vld [vmem:[#allocation8 + $0x164] sm:$0xf]
    %v513 = vld [vmem:[#allocation8 + $0x168] sm:$0xf]
    %v514 = vld [vmem:[#allocation8 + $0x16c] sm:$0xf]
    %v515 = vld [vmem:[#allocation8 + $0x170] sm:$0xf]
    %v516 = vld [vmem:[#allocation8 + $0x174] sm:$0xf]
    %v517 = vld [vmem:[#allocation8 + $0x178] sm:$0xf]
    %v518 = vld [vmem:[#allocation8 + $0x17c] sm:$0xf]
    %v519 = vld [vmem:[#allocation8 + $0x180] sm:$0xf]
    %v520 = vld [vmem:[#allocation8 + $0x184] sm:$0xf]
    %v521 = vld [vmem:[#allocation8 + $0x188] sm:$0xf]
    %v522 = vld [vmem:[#allocation8 + $0x18c] sm:$0xf]
    %v523 = vld [vmem:[#allocation8 + $0x190] sm:$0xf]
    %v524 = vld [vmem:[#allocation8 + $0x194] sm:$0xf]
    %v525 = vld [vmem:[#allocation8 + $0x198] sm:$0xf]
    %v526 = vld [vmem:[#allocation8 + $0x19c] sm:$0xf]
    %v527 = vld [vmem:[#allocation8 + $0x1a0] sm:$0xf]
    %v528 = vld [vmem:[#allocation8 + $0x1a4] sm:$0xf]
    %v529 = vld [vmem:[#allocation8 + $0x1a8] sm:$0xf]
    %v530 = vld [vmem:[#allocation8 + $0x1ac] sm:$0xf]
    %v531 = vld [vmem:[#allocation8 + $0x1b0] sm:$0xf]
    %v532 = vld [vmem:[#allocation8 + $0x1b4] sm:$0xf]
    %v533 = vld [vmem:[#allocation8 + $0x1b8] sm:$0xf]
    %v534 = vld [vmem:[#allocation8 + $0x1bc] sm:$0xf]
    %v535 = vld [vmem:[#allocation8 + $0x1c0] sm:$0xf]
    %v536 = vld [vmem:[#allocation8 + $0x1c4] sm:$0xf]
    %v537 = vld [vmem:[#allocation8 + $0x1c8] sm:$0xf]
    %v538 = vld [vmem:[#allocation8 + $0x1cc] sm:$0xf]
    %v539 = vld [vmem:[#allocation8 + $0x1d0] sm:$0xf]
    %v540 = vld [vmem:[#allocation8 + $0x1d4] sm:$0xf]
    %v541 = vld [vmem:[#allocation8 + $0x1d8] sm:$0xf]
    %v542 = vld [vmem:[#allocation8 + $0x1dc] sm:$0xf]
    %v543 = vld [vmem:[#allocation8 + $0x1e0] sm:$0xf]
    %v544 = vld [vmem:[#allocation8 + $0x1e4] sm:$0xf]
    %v545 = vld [vmem:[#allocation8 + $0x1e8] sm:$0xf]
    %v546 = vld [vmem:[#allocation8 + $0x1ec] sm:$0xf]
    %v547 = vld [vmem:[#allocation8 + $0x1f0] sm:$0xf]
    %v548 = vld [vmem:[#allocation8 + $0x1f4] sm:$0xf]
    %v549 = vld [vmem:[#allocation8 + $0x1f8] sm:$0xf]
    %v550 = vld [vmem:[#allocation8 + $0x1fc] sm:$0xf]
    %v551 = vld [vmem:[%s4] sm:$0x1]
    %v553 = vlaneseq
    %v554 = vshrl.u32 %v553, 7
    %v555 = vsub.s32 0, %v554
    %v556 = vrot.slane %v551, %v555
    %v686 = vunpack.c.l.b16 %v423
    %v687 = vunpack.c.l.b16 %v424
    %v688 = vunpack.c.l.b16 %v425
    %v689 = vunpack.c.l.b16 %v426
    %v690 = vunpack.c.l.b16 %v427
    %v691 = vunpack.c.l.b16 %v428
    %v692 = vunpack.c.l.b16 %v429
    %v693 = vunpack.c.l.b16 %v430
    %v694 = vunpack.c.l.b16 %v431
    %v695 = vunpack.c.l.b16 %v432
    %v696 = vunpack.c.l.b16 %v433
    %v697 = vunpack.c.l.b16 %v434
    %v698 = vunpack.c.l.b16 %v435
    %v699 = vunpack.c.l.b16 %v436
    %v700 = vunpack.c.l.b16 %v437
    %v701 = vunpack.c.l.b16 %v438
    %v702 = vunpack.c.l.b16 %v439
    %v703 = vunpack.c.l.b16 %v440
    %v704 = vunpack.c.l.b16 %v441
    %v705 = vunpack.c.l.b16 %v442
    %v706 = vunpack.c.l.b16 %v443
    %v707 = vunpack.c.l.b16 %v444
    %v708 = vunpack.c.l.b16 %v445
    %v709 = vunpack.c.l.b16 %v446
    %v710 = vunpack.c.l.b16 %v447
    %v711 = vunpack.c.l.b16 %v448
    %v712 = vunpack.c.l.b16 %v449
    %v713 = vunpack.c.l.b16 %v450
    %v714 = vunpack.c.l.b16 %v451
    %v715 = vunpack.c.l.b16 %v452
    %v716 = vunpack.c.l.b16 %v453
    %v717 = vunpack.c.l.b16 %v454
    %v718 = vunpack.c.l.b16 %v455
    %v719 = vunpack.c.l.b16 %v456
    %v720 = vunpack.c.l.b16 %v457
    %v721 = vunpack.c.l.b16 %v458
    %v722 = vunpack.c.l.b16 %v459
    %v723 = vunpack.c.l.b16 %v460
    %v724 = vunpack.c.l.b16 %v461
    %v725 = vunpack.c.l.b16 %v462
    %v726 = vunpack.c.l.b16 %v463
    %v727 = vunpack.c.l.b16 %v464
    %v728 = vunpack.c.l.b16 %v465
    %v729 = vunpack.c.l.b16 %v466
    %v730 = vunpack.c.l.b16 %v467
    %v731 = vunpack.c.l.b16 %v468
    %v732 = vunpack.c.l.b16 %v469
    %v733 = vunpack.c.l.b16 %v470
    %v734 = vunpack.c.l.b16 %v471
    %v735 = vunpack.c.l.b16 %v472
    %v736 = vunpack.c.l.b16 %v473
    %v737 = vunpack.c.l.b16 %v474
    %v738 = vunpack.c.l.b16 %v475
    %v739 = vunpack.c.l.b16 %v476
    %v740 = vunpack.c.l.b16 %v477
    %v741 = vunpack.c.l.b16 %v478
    %v742 = vunpack.c.l.b16 %v479
    %v743 = vunpack.c.l.b16 %v480
    %v744 = vunpack.c.l.b16 %v481
    %v745 = vunpack.c.l.b16 %v482
    %v746 = vunpack.c.l.b16 %v483
    %v747 = vunpack.c.l.b16 %v484
    %v748 = vunpack.c.l.b16 %v485
    %v749 = vunpack.c.l.b16 %v486
    %v750 = vunpack.c.l.b16 %v487
    %v751 = vunpack.c.l.b16 %v488
    %v752 = vunpack.c.l.b16 %v489
    %v753 = vunpack.c.l.b16 %v490
    %v754 = vunpack.c.l.b16 %v491
    %v755 = vunpack.c.l.b16 %v492
    %v756 = vunpack.c.l.b16 %v493
    %v757 = vunpack.c.l.b16 %v494
    %v758 = vunpack.c.l.b16 %v495
    %v759 = vunpack.c.l.b16 %v496
    %v760 = vunpack.c.l.b16 %v497
    %v761 = vunpack.c.l.b16 %v498
    %v762 = vunpack.c.l.b16 %v499
    %v763 = vunpack.c.l.b16 %v500
    %v764 = vunpack.c.l.b16 %v501
    %v765 = vunpack.c.l.b16 %v502
    %v766 = vunpack.c.l.b16 %v503
    %v767 = vunpack.c.l.b16 %v504
    %v768 = vunpack.c.l.b16 %v505
    %v769 = vunpack.c.l.b16 %v506
    %v770 = vunpack.c.l.b16 %v507
    %v771 = vunpack.c.l.b16 %v508
    %v772 = vunpack.c.l.b16 %v509
    %v773 = vunpack.c.l.b16 %v510
    %v774 = vunpack.c.l.b16 %v511
    %v775 = vunpack.c.l.b16 %v512
    %v776 = vunpack.c.l.b16 %v513
    %v777 = vunpack.c.l.b16 %v514
    %v778 = vunpack.c.l.b16 %v515
    %v779 = vunpack.c.l.b16 %v516
    %v780 = vunpack.c.l.b16 %v517
    %v781 = vunpack.c.l.b16 %v518
    %v782 = vunpack.c.l.b16 %v519
    %v783 = vunpack.c.l.b16 %v520
    %v784 = vunpack.c.l.b16 %v521
    %v785 = vunpack.c.l.b16 %v522
    %v786 = vunpack.c.l.b16 %v523
    %v787 = vunpack.c.l.b16 %v524
    %v788 = vunpack.c.l.b16 %v525
    %v789 = vunpack.c.l.b16 %v526
    %v790 = vunpack.c.l.b16 %v527
    %v791 = vunpack.c.l.b16 %v528
    %v792 = vunpack.c.l.b16 %v529
    %v793 = vunpack.c.l.b16 %v530
    %v794 = vunpack.c.l.b16 %v531
    %v795 = vunpack.c.l.b16 %v532
    %v796 = vunpack.c.l.b16 %v533
    %v797 = vunpack.c.l.b16 %v534
    %v798 = vunpack.c.l.b16 %v535
    %v799 = vunpack.c.l.b16 %v536
    %v800 = vunpack.c.l.b16 %v537
    %v801 = vunpack.c.l.b16 %v538
    %v802 = vunpack.c.l.b16 %v539
    %v803 = vunpack.c.l.b16 %v540
    %v804 = vunpack.c.l.b16 %v541
    %v805 = vunpack.c.l.b16 %v542
    %v806 = vunpack.c.l.b16 %v543
    %v807 = vunpack.c.l.b16 %v544
    %v808 = vunpack.c.l.b16 %v545
    %v809 = vunpack.c.l.b16 %v546
    %v810 = vunpack.c.l.b16 %v547
    %v811 = vunpack.c.l.b16 %v548
    %v812 = vunpack.c.l.b16 %v549
    %v813 = vunpack.c.l.b16 %v550
    %v814 = vpack.c.b16 %v687, %v686
    %v815 = vpack.c.b16 %v689, %v688
    %v816 = vpack.c.b16 %v691, %v690
    %v817 = vpack.c.b16 %v693, %v692
    %v818 = vpack.c.b16 %v695, %v694
    %v819 = vpack.c.b16 %v697, %v696
    %v820 = vpack.c.b16 %v699, %v698
    %v821 = vpack.c.b16 %v701, %v700
    %v822 = vpack.c.b16 %v703, %v702
    %v823 = vpack.c.b16 %v705, %v704
    %v824 = vpack.c.b16 %v707, %v706
    %v825 = vpack.c.b16 %v709, %v708
    %v826 = vpack.c.b16 %v711, %v710
    %v827 = vpack.c.b16 %v713, %v712
    %v828 = vpack.c.b16 %v715, %v714
    %v829 = vpack.c.b16 %v717, %v716
    %v830 = vpack.c.b16 %v719, %v718
    %v831 = vpack.c.b16 %v721, %v720
    %v832 = vpack.c.b16 %v723, %v722
    %v833 = vpack.c.b16 %v725, %v724
    %v834 = vpack.c.b16 %v727, %v726
    %v835 = vpack.c.b16 %v729, %v728
    %v836 = vpack.c.b16 %v731, %v730
    %v837 = vpack.c.b16 %v733, %v732
    %v838 = vpack.c.b16 %v735, %v734
    %v839 = vpack.c.b16 %v737, %v736
    %v840 = vpack.c.b16 %v739, %v738
    %v841 = vpack.c.b16 %v741, %v740
    %v842 = vpack.c.b16 %v743, %v742
    %v843 = vpack.c.b16 %v745, %v744
    %v844 = vpack.c.b16 %v747, %v746
    %v845 = vpack.c.b16 %v749, %v748
    %v846 = vpack.c.b16 %v751, %v750
    %v847 = vpack.c.b16 %v753, %v752
    %v848 = vpack.c.b16 %v755, %v754
    %v849 = vpack.c.b16 %v757, %v756
    %v850 = vpack.c.b16 %v759, %v758
    %v851 = vpack.c.b16 %v761, %v760
    %v852 = vpack.c.b16 %v763, %v762
    %v853 = vpack.c.b16 %v765, %v764
    %v854 = vpack.c.b16 %v767, %v766
    %v855 = vpack.c.b16 %v769, %v768
    %v856 = vpack.c.b16 %v771, %v770
    %v857 = vpack.c.b16 %v773, %v772
    %v858 = vpack.c.b16 %v775, %v774
    %v859 = vpack.c.b16 %v777, %v776
    %v860 = vpack.c.b16 %v779, %v778
    %v861 = vpack.c.b16 %v781, %v780
    %v862 = vpack.c.b16 %v783, %v782
    %v863 = vpack.c.b16 %v785, %v784
    %v864 = vpack.c.b16 %v787, %v786
    %v865 = vpack.c.b16 %v789, %v788
    %v866 = vpack.c.b16 %v791, %v790
    %v867 = vpack.c.b16 %v793, %v792
    %v868 = vpack.c.b16 %v795, %v794
    %v869 = vpack.c.b16 %v797, %v796
    %v870 = vpack.c.b16 %v799, %v798
    %v871 = vpack.c.b16 %v801, %v800
    %v872 = vpack.c.b16 %v803, %v802
    %v873 = vpack.c.b16 %v805, %v804
    %v874 = vpack.c.b16 %v807, %v806
    %v875 = vpack.c.b16 %v809, %v808
    %v876 = vpack.c.b16 %v811, %v810
    %v877 = vpack.c.b16 %v813, %v812
    %942 = vmatprep.subr.bf16.mxu0 0
    %943 = vmatpush1.bf16.msra.mxu0 %v821
    %944 = vmatprep.subr.bf16.mxu0 0
    %945 = vmatpush1.bf16.msra.mxu0 %v820
    %946 = vmatprep.subr.bf16.mxu0 0
    %947 = vmatpush1.bf16.msra.mxu0 %v819
    %948 = vmatprep.subr.bf16.mxu0 0
    %949 = vmatpush1.bf16.msra.mxu0 %v818
    %950 = vmatprep.subr.bf16.mxu0 0
    %951 = vmatpush1.bf16.msra.mxu0 %v817
    %952 = vmatprep.subr.bf16.mxu0 0
    %953 = vmatpush1.bf16.msra.mxu0 %v816
    %954 = vmatprep.subr.bf16.mxu0 0
    %955 = vmatpush1.bf16.msra.mxu0 %v815
    %956 = vmatprep.subr.bf16.mxu0 0
    %957 = vmatpush1.bf16.msra.mxu0 %v814
    %958 = vmatprep.subr.bf16.mxu0 0
    %959 = vmatpush2.bf16.msra.mxu0 %v829
    %960 = vmatprep.subr.bf16.mxu0 0
    %961 = vmatpush2.bf16.msra.mxu0 %v828
    %962 = vmatprep.subr.bf16.mxu0 0
    %963 = vmatpush2.bf16.msra.mxu0 %v827
    %964 = vmatprep.subr.bf16.mxu0 0
    %965 = vmatpush2.bf16.msra.mxu0 %v826
    %966 = vmatprep.subr.bf16.mxu0 0
    %967 = vmatpush2.bf16.msra.mxu0 %v825
    %968 = vmatprep.subr.bf16.mxu0 0
    %969 = vmatpush2.bf16.msra.mxu0 %v824
    %970 = vmatprep.subr.bf16.mxu0 0
    %971 = vmatpush2.bf16.msra.mxu0 %v823
    %972 = vmatprep.subr.bf16.mxu0 0
    %973 = vmatpush2.bf16.msra.mxu0 %v822
    %974 = vmatprep.mubr.bf16.mxu0 %v416
    %975 = vmatmul.mubr.bf16.gmra.mxu0 %v415
    %v976 = vpop.f32.mrf.mxu0
    %v977 = vadd.f32 %v556, %v976
    %v978 = vpop.f32.mrf.mxu0
    %v979 = vpop.f32.mrf.mxu0
    %v980 = vpop.f32.mrf.mxu0
    %981 = vdwg.mxu0
    %982 = vmatprep.subr.bf16.mxu0 0
    %983 = vmatpush1.bf16.msra.mxu0 %v837
    %984 = vmatprep.subr.bf16.mxu0 0
    %985 = vmatpush1.bf16.msra.mxu0 %v836
    %986 = vmatprep.subr.bf16.mxu0 0
    %987 = vmatpush1.bf16.msra.mxu0 %v835
    %988 = vmatprep.subr.bf16.mxu0 0
    %989 = vmatpush1.bf16.msra.mxu0 %v834
    %990 = vmatprep.subr.bf16.mxu0 0
    %991 = vmatpush1.bf16.msra.mxu0 %v833
    %992 = vmatprep.subr.bf16.mxu0 0
    %993 = vmatpush1.bf16.msra.mxu0 %v832
    %994 = vmatprep.subr.bf16.mxu0 0
    %995 = vmatpush1.bf16.msra.mxu0 %v831
    %996 = vmatprep.subr.bf16.mxu0 0
    %997 = vmatpush1.bf16.msra.mxu0 %v830
    %998 = vmatprep.subr.bf16.mxu0 0
    %999 = vmatpush2.bf16.msra.mxu0 %v845
    %1000 = vmatprep.subr.bf16.mxu0 0
    %1001 = vmatpush2.bf16.msra.mxu0 %v844
    %1002 = vmatprep.subr.bf16.mxu0 0
    %1003 = vmatpush2.bf16.msra.mxu0 %v843
    %1004 = vmatprep.subr.bf16.mxu0 0
    %1005 = vmatpush2.bf16.msra.mxu0 %v842
    %1006 = vmatprep.subr.bf16.mxu0 0
    %1007 = vmatpush2.bf16.msra.mxu0 %v841
    %1008 = vmatprep.subr.bf16.mxu0 0
    %1009 = vmatpush2.bf16.msra.mxu0 %v840
    %1010 = vmatprep.subr.bf16.mxu0 0
    %1011 = vmatpush2.bf16.msra.mxu0 %v839
    %1012 = vmatprep.subr.bf16.mxu0 0
    %1013 = vmatpush2.bf16.msra.mxu0 %v838
    %1014 = vmatprep.mubr.bf16.mxu0 %v418
    %1015 = vmatmul.mubr.bf16.gmra.mxu0 %v417
    %v1016 = vpop.f32.mrf.mxu0
    %v1017 = vadd.f32 %v977, %v1016
    %v1018 = vpop.f32.mrf.mxu0
    %v1019 = vpop.f32.mrf.mxu0
    %v1020 = vpop.f32.mrf.mxu0
    %1021 = vdwg.mxu0
    %1022 = vmatprep.subr.bf16.mxu0 0
    %1023 = vmatpush1.bf16.msra.mxu0 %v853
    %1024 = vmatprep.subr.bf16.mxu0 0
    %1025 = vmatpush1.bf16.msra.mxu0 %v852
    %1026 = vmatprep.subr.bf16.mxu0 0
    %1027 = vmatpush1.bf16.msra.mxu0 %v851
    %1028 = vmatprep.subr.bf16.mxu0 0
    %1029 = vmatpush1.bf16.msra.mxu0 %v850
    %1030 = vmatprep.subr.bf16.mxu0 0
    %1031 = vmatpush1.bf16.msra.mxu0 %v849
    %1032 = vmatprep.subr.bf16.mxu0 0
    %1033 = vmatpush1.bf16.msra.mxu0 %v848
    %1034 = vmatprep.subr.bf16.mxu0 0
    %1035 = vmatpush1.bf16.msra.mxu0 %v847
    %1036 = vmatprep.subr.bf16.mxu0 0
    %1037 = vmatpush1.bf16.msra.mxu0 %v846
    %1038 = vmatprep.subr.bf16.mxu0 0
    %1039 = vmatpush2.bf16.msra.mxu0 %v861
    %1040 = vmatprep.subr.bf16.mxu0 0
    %1041 = vmatpush2.bf16.msra.mxu0 %v860
    %1042 = vmatprep.subr.bf16.mxu0 0
    %1043 = vmatpush2.bf16.msra.mxu0 %v859
    %1044 = vmatprep.subr.bf16.mxu0 0
    %1045 = vmatpush2.bf16.msra.mxu0 %v858
    %1046 = vmatprep.subr.bf16.mxu0 0
    %1047 = vmatpush2.bf16.msra.mxu0 %v857
    %1048 = vmatprep.subr.bf16.mxu0 0
    %1049 = vmatpush2.bf16.msra.mxu0 %v856
    %1050 = vmatprep.subr.bf16.mxu0 0
    %1051 = vmatpush2.bf16.msra.mxu0 %v855
    %1052 = vmatprep.subr.bf16.mxu0 0
    %1053 = vmatpush2.bf16.msra.mxu0 %v854
    %1054 = vmatprep.mubr.bf16.mxu0 %v420
    %1055 = vmatmul.mubr.bf16.gmra.mxu0 %v419
    %v1056 = vpop.f32.mrf.mxu0
    %v1057 = vadd.f32 %v1017, %v1056
    %v1058 = vpop.f32.mrf.mxu0
    %v1059 = vpop.f32.mrf.mxu0
    %v1060 = vpop.f32.mrf.mxu0
    %1061 = vdwg.mxu0
    %1062 = vmatprep.subr.bf16.mxu0 0
    %1063 = vmatpush1.bf16.msra.mxu0 %v869
    %1064 = vmatprep.subr.bf16.mxu0 0
    %1065 = vmatpush1.bf16.msra.mxu0 %v868
    %1066 = vmatprep.subr.bf16.mxu0 0
    %1067 = vmatpush1.bf16.msra.mxu0 %v867
    %1068 = vmatprep.subr.bf16.mxu0 0
    %1069 = vmatpush1.bf16.msra.mxu0 %v866
    %1070 = vmatprep.subr.bf16.mxu0 0
    %1071 = vmatpush1.bf16.msra.mxu0 %v865
    %1072 = vmatprep.subr.bf16.mxu0 0
    %1073 = vmatpush1.bf16.msra.mxu0 %v864
    %1074 = vmatprep.subr.bf16.mxu0 0
    %1075 = vmatpush1.bf16.msra.mxu0 %v863
    %1076 = vmatprep.subr.bf16.mxu0 0
    %1077 = vmatpush1.bf16.msra.mxu0 %v862
    %1078 = vmatprep.subr.bf16.mxu0 0
    %1079 = vmatpush2.bf16.msra.mxu0 %v877
    %1080 = vmatprep.subr.bf16.mxu0 0
    %1081 = vmatpush2.bf16.msra.mxu0 %v876
    %1082 = vmatprep.subr.bf16.mxu0 0
    %1083 = vmatpush2.bf16.msra.mxu0 %v875
    %1084 = vmatprep.subr.bf16.mxu0 0
    %1085 = vmatpush2.bf16.msra.mxu0 %v874
    %1086 = vmatprep.subr.bf16.mxu0 0
    %1087 = vmatpush2.bf16.msra.mxu0 %v873
    %1088 = vmatprep.subr.bf16.mxu0 0
    %1089 = vmatpush2.bf16.msra.mxu0 %v872
    %1090 = vmatprep.subr.bf16.mxu0 0
    %1091 = vmatpush2.bf16.msra.mxu0 %v871
    %1092 = vmatprep.subr.bf16.mxu0 0
    %1093 = vmatpush2.bf16.msra.mxu0 %v870
    %1094 = vmatprep.mubr.bf16.mxu0 %v422
    %1095 = vmatmul.mubr.bf16.gmra.mxu0 %v421
    %v1096 = vpop.f32.mrf.mxu0
    %v1097 = vadd.f32 %v1057, %v1096
    %v1098 = vpop.f32.mrf.mxu0
    %v1099 = vpop.f32.mrf.mxu0
    %v1100 = vpop.f32.mrf.mxu0
    %1101 = vdwg.mxu0
    %1102 = vst [vmem:[#allocation10] sm:$0xff] %v1097
    // Predicated region
    $region38: #{tpu_custom_call.1} parent=1 // pred_check
      _
    $region39: #{tpu_custom_call.1} parent=1 // pred_check_branch
      %1104 = sbr.rel (0) target = $region41
    $region40: #{tpu_custom_call.1} parent=1 // pred_region
      %s1106 = ssub.s32 128, 32
      %1107 = vsyncadd [#allocation4], %s1106
      %s1108 = sshll.u32 [#allocation10], 4
      %s1109 = int_to_ptr.vmem [resolvable:$true] %s1108
      %1114 = dma.vmem_to_hbm [thread:$0]  %s1109, 32, %s5, [#allocation4], 32, 32, 2
    $region41: #{tpu_custom_call.1} parent=1 // pred_fallthru
      _
    // Predicated region
    $region42: #{tpu_custom_call.1} parent=1 // pred_check
      _
    $region43: #{tpu_custom_call.1} parent=1 // pred_check_branch
      %1116 = sbr.rel (0) target = $region45
    $region44: #{tpu_custom_call.1} parent=1 // pred_region
      %1117 = dma.done [#allocation4], 128
    $region45: #{tpu_custom_call.1} parent=1 // pred_fallthru
      _
    %1118 = vsyncpa [#allocation3], 1
    %1119 = vsyncpa [#allocation6], 1
    %1120 = vsyncpa [#allocation9], 1
    %1121 = vsyncpa [#allocation4], 1

// kernel: tpu_custom_call.1
$region0: #{tpu_custom_call.1}
  #allocation0 [shape = 'u32[]', space=smem, size = 0x4, offset = 0x4, fixed_abs, tag = 'smem constant byte address 0x4 - core index']
  #allocation1 [shape = 'u32[144,128]{1,0:T(1,128)}', space=vmem, size = 0x12000, scoped, tag = 'internal scratch']
  %s0 = inlined_call_operand.hbm [shape: f32[2,8], index: 0, kind: input, shape index: {}]
  %s1 = inlined_call_operand.hbm [shape: bf16[8,1024], index: 1, kind: input, shape index: {}]
  %s2 = inlined_call_operand.hbm [shape: bf16[1,1024], index: 2, kind: input, shape index: {}]
  %s3 = inlined_call_operand.hbm [shape: bf16[1024,128], index: 3, kind: input, shape index: {}]
  %s4 = inlined_call_operand.vmem [shape: f32[1,128], index: 4, kind: input, shape index: {}]
  %s5 = inlined_call_operand.hbm [shape: f32[2,128], index: 5, kind: output, shape index: {}]
  %s6 = sld [smem:[#allocation0]]
  $region46: #{tpu_custom_call.1} parent=0
    _
  %s8 = ssub.s32 1, %s6
  %s9 = scalar_select 0, %s8, %s6
  $region1: #{tpu_custom_call.1} parent=0
    #allocation2 [shape = 'u8[4096]{0}', space=vmem, size = 0x1000, scoped, tag = 'input window, operand 0, single buffered']
    #allocation3 [shape = 's32[1]{0}', space=sflag, size = 0x4, scoped, tag = 'scoped memory for tpu_custom_call.1']
    #allocation4 [shape = 's32[1]{0}', space=sflag, size = 0x4, scoped, tag = 'scoped memory for tpu_custom_call.1']
    #allocation5 [shape = 'u8[16384]{0}', space=vmem, size = 0x4000, scoped, tag = 'input window, operand 1, single buffered']
    #allocation6 [shape = 's32[1]{0}', space=sflag, size = 0x4, scoped, tag = 'scoped memory for tpu_custom_call.1']
    #allocation7 [shape = 'u8[4096]{0}', space=vmem, size = 0x1000, scoped, tag = 'input window, operand 2, single buffered']
    #allocation8 [shape = 'u8[262144]{0}', space=vmem, size = 0x40000, scoped, tag = 'input window, operand 3, single buffered']
    #allocation9 [shape = 's32[1]{0}', space=sflag, size = 0x4, scoped, tag = 'scoped memory for tpu_custom_call.1']
    #allocation10 [shape = 'u8[4096]{0}', space=vmem, size = 0x1000, scoped, tag = 'output window, operand 0, single buffered']
    %10 = vsyncpa [#allocation3], 0
    %11 = vsyncpa [#allocation6], 0
    %12 = vsyncpa [#allocation9], 0
    %13 = vsyncpa [#allocation4], 0
    // Predicated region
    $region2: #{tpu_custom_call.1} parent=1 // pred_check
      _
    $region3: #{tpu_custom_call.1} parent=1 // pred_check_branch
      %15 = sbr.rel (0) target = $region5
    $region4: #{tpu_custom_call.1} parent=1 // pred_region
      %s17 = ssub.s32 128, 32
      %18 = vsyncadd [#allocation3], %s17
      %s19 = sshll.u32 [#allocation2], 4
      %s20 = int_to_ptr.vmem [resolvable:$true] %s19
      %25 = dma.hbm_to_vmem [thread:$0]  %s0, 32, %s20, [#allocation3], 32, 32, 2
    $region5: #{tpu_custom_call.1} parent=1 // pred_fallthru
      _
    // Predicated region
    $region6: #{tpu_custom_call.1} parent=1 // pred_check
      _
    $region7: #{tpu_custom_call.1} parent=1 // pred_check_branch
      %27 = sbr.rel (0) target = $region9
    $region8: #{tpu_custom_call.1} parent=1 // pred_region
      %s29 = ssub.s32 512, 512
      %30 = vsyncadd [#allocation6], %s29
      %s32 = sshll.u32 [#allocation5], 4
      %s33 = int_to_ptr.vmem [resolvable:$true] %s32
      %35 = dma.hbm_to_vmem [thread:$0]  %s1, 512, %s33, [#allocation6]
    $region9: #{tpu_custom_call.1} parent=1 // pred_fallthru
      _
    // Predicated region
    $region10: #{tpu_custom_call.1} parent=1 // pred_check
      _
    $region11: #{tpu_custom_call.1} parent=1 // pred_check_branch
      %37 = sbr.rel (0) target = $region13
    $region12: #{tpu_custom_call.1} parent=1 // pred_region
      %s39 = ssub.s32 128, 128
      %40 = vsyncadd [#allocation6], %s39
      %s42 = sshll.u32 [#allocation7], 4
      %s43 = int_to_ptr.vmem [resolvable:$true] %s42
      %45 = dma.hbm_to_vmem [thread:$0]  %s2, 128, %s43, [#allocation6]
    $region13: #{tpu_custom_call.1} parent=1 // pred_fallthru
      _
    // Predicated region
    $region14: #{tpu_custom_call.1} parent=1 // pred_check
      _
    $region15: #{tpu_custom_call.1} parent=1 // pred_check_branch
      %47 = sbr.rel (0) target = $region17
    $region16: #{tpu_custom_call.1} parent=1 // pred_region
      %s49 = ssub.s32 8192, 8192
      %50 = vsyncadd [#allocation9], %s49
      %s51 = sshll.u32 [#allocation8], 4
      %s52 = int_to_ptr.vmem [resolvable:$true] %s51
      %57 = dma.hbm_to_vmem [thread:$0]  %s3, 8192, %s52, [#allocation9], 64, 64, 4
    $region17: #{tpu_custom_call.1} parent=1 // pred_fallthru
      _
    // Predicated region
    $region18: #{tpu_custom_call.1} parent=1 // pred_check
      _
    $region19: #{tpu_custom_call.1} parent=1 // pred_check_branch
      %59 = sbr.rel (0) target = $region21
    $region20: #{tpu_custom_call.1} parent=1 // pred_region
      _
    $region21: #{tpu_custom_call.1} parent=1 // pred_fallthru
      _
    // Predicated region
    $region22: #{tpu_custom_call.1} parent=1 // pred_check
      _
    $region23: #{tpu_custom_call.1} parent=1 // pred_check_branch
      %61 = sbr.rel (0) target = $region25
    $region24: #{tpu_custom_call.1} parent=1 // pred_region
      %62 = dma.done [#allocation3], 128
    $region25: #{tpu_custom_call.1} parent=1 // pred_fallthru
      _
    // Predicated region
    $region26: #{tpu_custom_call.1} parent=1 // pred_check
      _
    $region27: #{tpu_custom_call.1} parent=1 // pred_check_branch
      %64 = sbr.rel (0) target = $region29
    $region28: #{tpu_custom_call.1} parent=1 // pred_region
      %65 = dma.done [#allocation6], 512
    $region29: #{tpu_custom_call.1} parent=1 // pred_fallthru
      _
    // Predicated region
    $region30: #{tpu_custom_call.1} parent=1 // pred_check
      _
    $region31: #{tpu_custom_call.1} parent=1 // pred_check_branch
      %67 = sbr.rel (0) target = $region33
    $region32: #{tpu_custom_call.1} parent=1 // pred_region
      %68 = dma.done [#allocation6], 128
    $region33: #{tpu_custom_call.1} parent=1 // pred_fallthru
      _
    // Predicated region
    $region34: #{tpu_custom_call.1} parent=1 // pred_check
      _
    $region35: #{tpu_custom_call.1} parent=1 // pred_check_branch
      %70 = sbr.rel (0) target = $region37
    $region36: #{tpu_custom_call.1} parent=1 // pred_region
      %71 = dma.done [#allocation9], 8192
    $region37: #{tpu_custom_call.1} parent=1 // pred_fallthru
      _
    %v73 = vld [vmem:[#allocation2] sm:$0xff]
    %v74 = vpack.c.bf16 %v73, %v73
    %v75 = vld [vmem:[#allocation5] sm:$0xff]
    %v76 = vld [vmem:[#allocation5 + $0x8] sm:$0xff]
    %v77 = vld [vmem:[#allocation5 + $0x10] sm:$0xff]
    %v78 = vld [vmem:[#allocation5 + $0x18] sm:$0xff]
    %v83 = vunpack.c.l.b16 %v75
    %v84 = vunpack.c.h.b16 %v75
    %v85 = vunpack.c.l.b16 %v76
    %v86 = vunpack.c.h.b16 %v76
    %v87 = vunpack.c.l.b16 %v77
    %v88 = vunpack.c.h.b16 %v77
    %v89 = vunpack.c.l.b16 %v78
    %v90 = vunpack.c.h.b16 %v78
    %v91 = vpack.c.b16 %v83, %v83
    %v92 = vpack.c.b16 %v84, %v84
    %v93 = vpack.c.b16 %v85, %v85
    %v94 = vpack.c.b16 %v86, %v86
    %v95 = vpack.c.b16 %v87, %v87
    %v96 = vpack.c.b16 %v88, %v88
    %v97 = vpack.c.b16 %v89, %v89
    %v98 = vpack.c.b16 %v90, %v90
    %vm99 = vcmask 64512
    %v101 = vsel %vm99, %v74, 0
    %vm103 = vcmask 1043456
    %v105 = vsel %vm103, %v91, 0
    %v108 = vsel %vm103, %v92, 0
    %v111 = vsel %vm103, %v93, 0
    %v114 = vsel %vm103, %v94, 0
    %v117 = vsel %vm103, %v95, 0
    %v120 = vsel %vm103, %v96, 0
    %v123 = vsel %vm103, %v97, 0
    %v126 = vsel %vm103, %v98, 0
    %128 = vmatprep.subr.bf16.mxu0 0
    %129 = vmatpush1.bf16.msra.mxu0 0
    %130 = vmatprep.subr.bf16.mxu0 0
    %131 = vmatpush1.bf16.msra.mxu0 0
    %132 = vmatprep.subr.bf16.mxu0 0
    %133 = vmatpush1.bf16.msra.mxu0 0
    %134 = vmatprep.subr.bf16.mxu0 0
    %135 = vmatpush1.bf16.msra.mxu0 0
    %136 = vmatprep.subr.bf16.mxu0 0
    %137 = vmatpush1.bf16.msra.mxu0 0
    %138 = vmatprep.subr.bf16.mxu0 0
    %139 = vmatpush1.bf16.msra.mxu0 0
    %140 = vmatprep.subr.bf16.mxu0 0
    %141 = vmatpush1.bf16.msra.mxu0 0
    %142 = vmatprep.subr.bf16.mxu0 %v108
    %143 = vmatpush1.bf16.msra.mxu0 %v105
    %144 = vmatprep.subr.bf16.mxu0 0
    %145 = vmatpush2.bf16.msra.mxu0 0
    %146 = vmatprep.subr.bf16.mxu0 0
    %147 = vmatpush2.bf16.msra.mxu0 0
    %148 = vmatprep.subr.bf16.mxu0 0
    %149 = vmatpush2.bf16.msra.mxu0 0
    %150 = vmatprep.subr.bf16.mxu0 0
    %151 = vmatpush2.bf16.msra.mxu0 0
    %152 = vmatprep.subr.bf16.mxu0 0
    %153 = vmatpush2.bf16.msra.mxu0 0
    %154 = vmatprep.subr.bf16.mxu0 0
    %155 = vmatpush2.bf16.msra.mxu0 0
    %156 = vmatprep.subr.bf16.mxu0 0
    %157 = vmatpush2.bf16.msra.mxu0 0
    %158 = vmatprep.subr.bf16.mxu0 0
    %159 = vmatpush2.bf16.msra.mxu0 0
    %160 = vmatprep.mubr.bf16.mxu0 0
    %161 = vmatmul.mubr.bf16.gmra.mxu0 %v101
    %v162 = vpop.f32.mrf.mxu0
    %v163 = vadd.f32 0.0, %v162
    %v164 = vpop.f32.mrf.mxu0
    %v165 = vadd.f32 0.0, %v164
    %v166 = vpop.f32.mrf.mxu0
    %v167 = vpop.f32.mrf.mxu0
    %168 = vdwg.mxu0
    %169 = vmatprep.subr.bf16.mxu0 0
    %170 = vmatpush1.bf16.msra.mxu0 0
    %171 = vmatprep.subr.bf16.mxu0 0
    %172 = vmatpush1.bf16.msra.mxu0 0
    %173 = vmatprep.subr.bf16.mxu0 0
    %174 = vmatpush1.bf16.msra.mxu0 0
    %175 = vmatprep.subr.bf16.mxu0 0
    %176 = vmatpush1.bf16.msra.mxu0 0
    %177 = vmatprep.subr.bf16.mxu0 0
    %178 = vmatpush1.bf16.msra.mxu0 0
    %179 = vmatprep.subr.bf16.mxu0 0
    %180 = vmatpush1.bf16.msra.mxu0 0
    %181 = vmatprep.subr.bf16.mxu0 0
    %182 = vmatpush1.bf16.msra.mxu0 0
    %183 = vmatprep.subr.bf16.mxu0 %v114
    %184 = vmatpush1.bf16.msra.mxu0 %v111
    %185 = vmatprep.subr.bf16.mxu0 0
    %186 = vmatpush2.bf16.msra.mxu0 0
    %187 = vmatprep.subr.bf16.mxu0 0
    %188 = vmatpush2.bf16.msra.mxu0 0
    %189 = vmatprep.subr.bf16.mxu0 0
    %190 = vmatpush2.bf16.msra.mxu0 0
    %191 = vmatprep.subr.bf16.mxu0 0
    %192 = vmatpush2.bf16.msra.mxu0 0
    %193 = vmatprep.subr.bf16.mxu0 0
    %194 = vmatpush2.bf16.msra.mxu0 0
    %195 = vmatprep.subr.bf16.mxu0 0
    %196 = vmatpush2.bf16.msra.mxu0 0
    %197 = vmatprep.subr.bf16.mxu0 0
    %198 = vmatpush2.bf16.msra.mxu0 0
    %199 = vmatprep.subr.bf16.mxu0 0
    %200 = vmatpush2.bf16.msra.mxu0 0
    %201 = vmatprep.mubr.bf16.mxu0 0
    %202 = vmatmul.mubr.bf16.gmra.mxu0 %v101
    %v203 = vpop.f32.mrf.mxu0
    %v204 = vadd.f32 0.0, %v203
    %v205 = vpop.f32.mrf.mxu0
    %v206 = vadd.f32 0.0, %v205
    %v207 = vpop.f32.mrf.mxu0
    %v208 = vpop.f32.mrf.mxu0
    %209 = vdwg.mxu0
    %210 = vmatprep.subr.bf16.mxu0 0
    %211 = vmatpush1.bf16.msra.mxu0 0
    %212 = vmatprep.subr.bf16.mxu0 0
    %213 = vmatpush1.bf16.msra.mxu0 0
    %214 = vmatprep.subr.bf16.mxu0 0
    %215 = vmatpush1.bf16.msra.mxu0 0
    %216 = vmatprep.subr.bf16.mxu0 0
    %217 = vmatpush1.bf16.msra.mxu0 0
    %218 = vmatprep.subr.bf16.mxu0 0
    %219 = vmatpush1.bf16.msra.mxu0 0
    %220 = vmatprep.subr.bf16.mxu0 0
    %221 = vmatpush1.bf16.msra.mxu0 0
    %222 = vmatprep.subr.bf16.mxu0 0
    %223 = vmatpush1.bf16.msra.mxu0 0
    %224 = vmatprep.subr.bf16.mxu0 %v120
    %225 = vmatpush1.bf16.msra.mxu0 %v117
    %226 = vmatprep.subr.bf16.mxu0 0
    %227 = vmatpush2.bf16.msra.mxu0 0
    %228 = vmatprep.subr.bf16.mxu0 0
    %229 = vmatpush2.bf16.msra.mxu0 0
    %230 = vmatprep.subr.bf16.mxu0 0
    %231 = vmatpush2.bf16.msra.mxu0 0
    %232 = vmatprep.subr.bf16.mxu0 0
    %233 = vmatpush2.bf16.msra.mxu0 0
    %234 = vmatprep.subr.bf16.mxu0 0
    %235 = vmatpush2.bf16.msra.mxu0 0
    %236 = vmatprep.subr.bf16.mxu0 0
    %237 = vmatpush2.bf16.msra.mxu0 0
    %238 = vmatprep.subr.bf16.mxu0 0
    %239 = vmatpush2.bf16.msra.mxu0 0
    %240 = vmatprep.subr.bf16.mxu0 0
    %241 = vmatpush2.bf16.msra.mxu0 0
    %242 = vmatprep.mubr.bf16.mxu0 0
    %243 = vmatmul.mubr.bf16.gmra.mxu0 %v101
    %v244 = vpop.f32.mrf.mxu0
    %v245 = vadd.f32 0.0, %v244
    %v246 = vpop.f32.mrf.mxu0
    %v247 = vadd.f32 0.0, %v246
    %v248 = vpop.f32.mrf.mxu0
    %v249 = vpop.f32.mrf.mxu0
    %250 = vdwg.mxu0
    %251 = vmatprep.subr.bf16.mxu0 0
    %252 = vmatpush1.bf16.msra.mxu0 0
    %253 = vmatprep.subr.bf16.mxu0 0
    %254 = vmatpush1.bf16.msra.mxu0 0
    %255 = vmatprep.subr.bf16.mxu0 0
    %256 = vmatpush1.bf16.msra.mxu0 0
    %257 = vmatprep.subr.bf16.mxu0 0
    %258 = vmatpush1.bf16.msra.mxu0 0
    %259 = vmatprep.subr.bf16.mxu0 0
    %260 = vmatpush1.bf16.msra.mxu0 0
    %261 = vmatprep.subr.bf16.mxu0 0
    %262 = vmatpush1.bf16.msra.mxu0 0
    %263 = vmatprep.subr.bf16.mxu0 0
    %264 = vmatpush1.bf16.msra.mxu0 0
    %265 = vmatprep.subr.bf16.mxu0 %v126
    %266 = vmatpush1.bf16.msra.mxu0 %v123
    %267 = vmatprep.subr.bf16.mxu0 0
    %268 = vmatpush2.bf16.msra.mxu0 0
    %269 = vmatprep.subr.bf16.mxu0 0
    %270 = vmatpush2.bf16.msra.mxu0 0
    %271 = vmatprep.subr.bf16.mxu0 0
    %272 = vmatpush2.bf16.msra.mxu0 0
    %273 = vmatprep.subr.bf16.mxu0 0
    %274 = vmatpush2.bf16.msra.mxu0 0
    %275 = vmatprep.subr.bf16.mxu0 0
    %276 = vmatpush2.bf16.msra.mxu0 0
    %277 = vmatprep.subr.bf16.mxu0 0
    %278 = vmatpush2.bf16.msra.mxu0 0
    %279 = vmatprep.subr.bf16.mxu0 0
    %280 = vmatpush2.bf16.msra.mxu0 0
    %281 = vmatprep.subr.bf16.mxu0 0
    %282 = vmatpush2.bf16.msra.mxu0 0
    %283 = vmatprep.mubr.bf16.mxu0 0
    %284 = vmatmul.mubr.bf16.gmra.mxu0 %v101
    %v285 = vpop.f32.mrf.mxu0
    %v286 = vadd.f32 0.0, %v285
    %v287 = vpop.f32.mrf.mxu0
    %v288 = vadd.f32 0.0, %v287
    %v289 = vpop.f32.mrf.mxu0
    %v290 = vpop.f32.mrf.mxu0
    %291 = vdwg.mxu0
    %v292 = vpack.c.bf16 %v163, %v163
    %v293 = vpack.c.bf16 %v165, %v165
    %v294 = vpack.c.bf16 %v204, %v204
    %v295 = vpack.c.bf16 %v206, %v206
    %v296 = vpack.c.bf16 %v245, %v245
    %v297 = vpack.c.bf16 %v247, %v247
    %v298 = vpack.c.bf16 %v286, %v286
    %v299 = vpack.c.bf16 %v288, %v288
    %v300 = vld [vmem:[#allocation7] sm:$0xff]
    %v302 = vcombine.high %v300, %v300
    %v304 = vunpack.c.l.s4 1966171168
    %v305 = vunpack.c.0.s8 %v304
    %v306 = vlaneseq
    %v307 = vshrl.u32 %v306, 7
    %v308 = vsub.s32 %v305, %v307
    %v309 = vrot.slane %v300, %v308
    %v311 = vunpack.c.l.s4 1966171168
    %v312 = vunpack.c.0.s8 %v311
    %v313 = vlaneseq
    %v314 = vshrl.u32 %v313, 7
    %v315 = vsub.s32 %v312, %v314
    %v316 = vrot.slane %v302, %v315
    %v317 = vcombine.high %v309, %v309
    %v318 = vcombine.high %v316, %v316
    %v320 = vunpack.c.l.s4 1966171168
    %v321 = vunpack.c.0.s8 %v320
    %v322 = vlaneseq
    %v323 = vshrl.u32 %v322, 7
    %v324 = vsub.s32 %v321, %v323
    %v325 = vrot.slane %v309, %v324
    %v327 = vunpack.c.l.s4 1966171168
    %v328 = vunpack.c.0.s8 %v327
    %v329 = vlaneseq
    %v330 = vshrl.u32 %v329, 7
    %v331 = vsub.s32 %v328, %v330
    %v332 = vrot.slane %v316, %v331
    %v334 = vunpack.c.l.s4 1966171168
    %v335 = vunpack.c.0.s8 %v334
    %v336 = vlaneseq
    %v337 = vshrl.u32 %v336, 7
    %v338 = vsub.s32 %v335, %v337
    %v339 = vrot.slane %v317, %v338
    %v341 = vunpack.c.l.s4 1966171168
    %v342 = vunpack.c.0.s8 %v341
    %v343 = vlaneseq
    %v344 = vshrl.u32 %v343, 7
    %v345 = vsub.s32 %v342, %v344
    %v346 = vrot.slane %v318, %v345
    %v347 = vcombine.high %v325, %v325
    %v348 = vcombine.high %v332, %v332
    %v349 = vcombine.high %v339, %v339
    %v350 = vcombine.high %v346, %v346
    %v352 = vpack.i.b16 %v325, %v325
    %v354 = vlaneseq
    %v355 = vshrl.u32 %v354, 7
    %v356 = vsub.s32 0, %v355
    %v357 = vrot.slane %v352, %v356
    %v359 = vpack.i.b16 %v339, %v339
    %v361 = vlaneseq
    %v362 = vshrl.u32 %v361, 7
    %v363 = vsub.s32 0, %v362
    %v364 = vrot.slane %v359, %v363
    %v366 = vpack.i.b16 %v347, %v347
    %v368 = vlaneseq
    %v369 = vshrl.u32 %v368, 7
    %v370 = vsub.s32 0, %v369
    %v371 = vrot.slane %v366, %v370
    %v373 = vpack.i.b16 %v349, %v349
    %v375 = vlaneseq
    %v376 = vshrl.u32 %v375, 7
    %v377 = vsub.s32 0, %v376
    %v378 = vrot.slane %v373, %v377
    %v380 = vpack.i.b16 %v332, %v332
    %v382 = vlaneseq
    %v383 = vshrl.u32 %v382, 7
    %v384 = vsub.s32 0, %v383
    %v385 = vrot.slane %v380, %v384
    %v387 = vpack.i.b16 %v346, %v346
    %v389 = vlaneseq
    %v390 = vshrl.u32 %v389, 7
    %v391 = vsub.s32 0, %v390
    %v392 = vrot.slane %v387, %v391
    %v394 = vpack.i.b16 %v348, %v348
    %v396 = vlaneseq
    %v397 = vshrl.u32 %v396, 7
    %v398 = vsub.s32 0, %v397
    %v399 = vrot.slane %v394, %v398
    %v401 = vpack.i.b16 %v350, %v350
    %v403 = vlaneseq
    %v404 = vshrl.u32 %v403, 7
    %v405 = vsub.s32 0, %v404
    %v406 = vrot.slane %v401, %v405
    %v407 = vadd.bf16 %v292, %v357
    %v408 = vadd.bf16 %v293, %v364
    %v409 = vadd.bf16 %v294, %v371
    %v410 = vadd.bf16 %v295, %v378
    %v411 = vadd.bf16 %v296, %v385
    %v412 = vadd.bf16 %v297, %v392
    %v413 = vadd.bf16 %v298, %v399
    %v414 = vadd.bf16 %v299, %v406
    %v415 = vmax.bf16 %v407, 0
    %v416 = vmax.bf16 %v408, 0
    %v417 = vmax.bf16 %v409, 0
    %v418 = vmax.bf16 %v410, 0
    %v419 = vmax.bf16 %v411, 0
    %v420 = vmax.bf16 %v412, 0
    %v421 = vmax.bf16 %v413, 0
    %v422 = vmax.bf16 %v414, 0
    %v423 = vld [vmem:[#allocation8] sm:$0xf]
    %v424 = vld [vmem:[#allocation8 + $0x4] sm:$0xf]
    %v425 = vld [vmem:[#allocation8 + $0x8] sm:$0xf]
    %v426 = vld [vmem:[#allocation8 + $0xc] sm:$0xf]
    %v427 = vld [vmem:[#allocation8 + $0x10] sm:$0xf]
    %v428 = vld [vmem:[#allocation8 + $0x14] sm:$0xf]
    %v429 = vld [vmem:[#allocation8 + $0x18] sm:$0xf]
    %v430 = vld [vmem:[#allocation8 + $0x1c] sm:$0xf]
    %v431 = vld [vmem:[#allocation8 + $0x20] sm:$0xf]
    %v432 = vld [vmem:[#allocation8 + $0x24] sm:$0xf]
    %v433 = vld [vmem:[#allocation8 + $0x28] sm:$0xf]
    %v434 = vld [vmem:[#allocation8 + $0x2c] sm:$0xf]
    %v435 = vld [vmem:[#allocation8 + $0x30] sm:$0xf]
    %v436 = vld [vmem:[#allocation8 + $0x34] sm:$0xf]
    %v437 = vld [vmem:[#allocation8 + $0x38] sm:$0xf]
    %v438 = vld [vmem:[#allocation8 + $0x3c] sm:$0xf]
    %v439 = vld [vmem:[#allocation8 + $0x40] sm:$0xf]
    %v440 = vld [vmem:[#allocation8 + $0x44] sm:$0xf]
    %v441 = vld [vmem:[#allocation8 + $0x48] sm:$0xf]
    %v442 = vld [vmem:[#allocation8 + $0x4c] sm:$0xf]
    %v443 = vld [vmem:[#allocation8 + $0x50] sm:$0xf]
    %v444 = vld [vmem:[#allocation8 + $0x54] sm:$0xf]
    %v445 = vld [vmem:[#allocation8 + $0x58] sm:$0xf]
    %v446 = vld [vmem:[#allocation8 + $0x5c] sm:$0xf]
    %v447 = vld [vmem:[#allocation8 + $0x60] sm:$0xf]
    %v448 = vld [vmem:[#allocation8 + $0x64] sm:$0xf]
    %v449 = vld [vmem:[#allocation8 + $0x68] sm:$0xf]
    %v450 = vld [vmem:[#allocation8 + $0x6c] sm:$0xf]
    %v451 = vld [vmem:[#allocation8 + $0x70] sm:$0xf]
    %v452 = vld [vmem:[#allocation8 + $0x74] sm:$0xf]
    %v453 = vld [vmem:[#allocation8 + $0x78] sm:$0xf]
    %v454 = vld [vmem:[#allocation8 + $0x7c] sm:$0xf]
    %v455 = vld [vmem:[#allocation8 + $0x80] sm:$0xf]
    %v456 = vld [vmem:[#allocation8 + $0x84] sm:$0xf]
    %v457 = vld [vmem:[#allocation8 + $0x88] sm:$0xf]
    %v458 = vld [vmem:[#allocation8 + $0x8c] sm:$0xf]
    %v459 = vld [vmem:[#allocation8 + $0x90] sm:$0xf]
    %v460 = vld [vmem:[#allocation8 + $0x94] sm:$0xf]
    %v461 = vld [vmem:[#allocation8 + $0x98] sm:$0xf]
    %v462 = vld [vmem:[#allocation8 + $0x9c] sm:$0xf]
    %v463 = vld [vmem:[#allocation8 + $0xa0] sm:$0xf]
    %v464 = vld [vmem:[#allocation8 + $0xa4] sm:$0xf]
    %v465 = vld [vmem:[#allocation8 + $0xa8] sm:$0xf]
    %v466 = vld [vmem:[#allocation8 + $0xac] sm:$0xf]
    %v467 = vld [vmem:[#allocation8 + $0xb0] sm:$0xf]
    %v468 = vld [vmem:[#allocation8 + $0xb4] sm:$0xf]
    %v469 = vld [vmem:[#allocation8 + $0xb8] sm:$0xf]
    %v470 = vld [vmem:[#allocation8 + $0xbc] sm:$0xf]
    %v471 = vld [vmem:[#allocation8 + $0xc0] sm:$0xf]
    %v472 = vld [vmem:[#allocation8 + $0xc4] sm:$0xf]
    %v473 = vld [vmem:[#allocation8 + $0xc8] sm:$0xf]
    %v474 = vld [vmem:[#allocation8 + $0xcc] sm:$0xf]
    %v475 = vld [vmem:[#allocation8 + $0xd0] sm:$0xf]
    %v476 = vld [vmem:[#allocation8 + $0xd4] sm:$0xf]
    %v477 = vld [vmem:[#allocation8 + $0xd8] sm:$0xf]
    %v478 = vld [vmem:[#allocation8 + $0xdc] sm:$0xf]
    %v479 = vld [vmem:[#allocation8 + $0xe0] sm:$0xf]
    %v480 = vld [vmem:[#allocation8 + $0xe4] sm:$0xf]
    %v481 = vld [vmem:[#allocation8 + $0xe8] sm:$0xf]
    %v482 = vld [vmem:[#allocation8 + $0xec] sm:$0xf]
    %v483 = vld [vmem:[#allocation8 + $0xf0] sm:$0xf]
    %v484 = vld [vmem:[#allocation8 + $0xf4] sm:$0xf]
    %v485 = vld [vmem:[#allocation8 + $0xf8] sm:$0xf]
    %v486 = vld [vmem:[#allocation8 + $0xfc] sm:$0xf]
    %v487 = vld [vmem:[#allocation8 + $0x100] sm:$0xf]
    %v488 = vld [vmem:[#allocation8 + $0x104] sm:$0xf]
    %v489 = vld [vmem:[#allocation8 + $0x108] sm:$0xf]
    %v490 = vld [vmem:[#allocation8 + $0x10c] sm:$0xf]
    %v491 = vld [vmem:[#allocation8 + $0x110] sm:$0xf]
    %v492 = vld [vmem:[#allocation8 + $0x114] sm:$0xf]
    %v493 = vld [vmem:[#allocation8 + $0x118] sm:$0xf]
    %v494 = vld [vmem:[#allocation8 + $0x11c] sm:$0xf]
    %v495 = vld [vmem:[#allocation8 + $0x120] sm:$0xf]
    %v496 = vld [vmem:[#allocation8 + $0x124] sm:$0xf]
    %v497 = vld [vmem:[#allocation8 + $0x128] sm:$0xf]
    %v498 = vld [vmem:[#allocation8 + $0x12c] sm:$0xf]
    %v499 = vld [vmem:[#allocation8 + $0x130] sm:$0xf]
    %v500 = vld [vmem:[#allocation8 + $0x134] sm:$0xf]
    %v501 = vld [vmem:[#allocation8 + $0x138] sm:$0xf]
    %v502 = vld [vmem:[#allocation8 + $0x13c] sm:$0xf]
    %v503 = vld [vmem:[#allocation8 + $0x140] sm:$0xf]
    %v504 = vld [vmem:[#allocation8 + $0x144] sm:$0xf]
    %v505 = vld [vmem:[#allocation8 + $0x148] sm:$0xf]
    %v506 = vld [vmem:[#allocation8 + $0x14c] sm:$0xf]
    %v507 = vld [vmem:[#allocation8 + $0x150] sm:$0xf]
    %v508 = vld [vmem:[#allocation8 + $0x154] sm:$0xf]
    %v509 = vld [vmem:[#allocation8 + $0x158] sm:$0xf]
    %v510 = vld [vmem:[#allocation8 + $0x15c] sm:$0xf]
    %v511 = vld [vmem:[#allocation8 + $0x160] sm:$0xf]
    %v512 = vld [vmem:[#allocation8 + $0x164] sm:$0xf]
    %v513 = vld [vmem:[#allocation8 + $0x168] sm:$0xf]
    %v514 = vld [vmem:[#allocation8 + $0x16c] sm:$0xf]
    %v515 = vld [vmem:[#allocation8 + $0x170] sm:$0xf]
    %v516 = vld [vmem:[#allocation8 + $0x174] sm:$0xf]
    %v517 = vld [vmem:[#allocation8 + $0x178] sm:$0xf]
    %v518 = vld [vmem:[#allocation8 + $0x17c] sm:$0xf]
    %v519 = vld [vmem:[#allocation8 + $0x180] sm:$0xf]
    %v520 = vld [vmem:[#allocation8 + $0x184] sm:$0xf]
    %v521 = vld [vmem:[#allocation8 + $0x188] sm:$0xf]
    %v522 = vld [vmem:[#allocation8 + $0x18c] sm:$0xf]
    %v523 = vld [vmem:[#allocation8 + $0x190] sm:$0xf]
    %v524 = vld [vmem:[#allocation8 + $0x194] sm:$0xf]
    %v525 = vld [vmem:[#allocation8 + $0x198] sm:$0xf]
    %v526 = vld [vmem:[#allocation8 + $0x19c] sm:$0xf]
    %v527 = vld [vmem:[#allocation8 + $0x1a0] sm:$0xf]
    %v528 = vld [vmem:[#allocation8 + $0x1a4] sm:$0xf]
    %v529 = vld [vmem:[#allocation8 + $0x1a8] sm:$0xf]
    %v530 = vld [vmem:[#allocation8 + $0x1ac] sm:$0xf]
    %v531 = vld [vmem:[#allocation8 + $0x1b0] sm:$0xf]
    %v532 = vld [vmem:[#allocation8 + $0x1b4] sm:$0xf]
    %v533 = vld [vmem:[#allocation8 + $0x1b8] sm:$0xf]
    %v534 = vld [vmem:[#allocation8 + $0x1bc] sm:$0xf]
    %v535 = vld [vmem:[#allocation8 + $0x1c0] sm:$0xf]
    %v536 = vld [vmem:[#allocation8 + $0x1c4] sm:$0xf]
    %v537 = vld [vmem:[#allocation8 + $0x1c8] sm:$0xf]
    %v538 = vld [vmem:[#allocation8 + $0x1cc] sm:$0xf]
    %v539 = vld [vmem:[#allocation8 + $0x1d0] sm:$0xf]
    %v540 = vld [vmem:[#allocation8 + $0x1d4] sm:$0xf]
    %v541 = vld [vmem:[#allocation8 + $0x1d8] sm:$0xf]
    %v542 = vld [vmem:[#allocation8 + $0x1dc] sm:$0xf]
    %v543 = vld [vmem:[#allocation8 + $0x1e0] sm:$0xf]
    %v544 = vld [vmem:[#allocation8 + $0x1e4] sm:$0xf]
    %v545 = vld [vmem:[#allocation8 + $0x1e8] sm:$0xf]
    %v546 = vld [vmem:[#allocation8 + $0x1ec] sm:$0xf]
    %v547 = vld [vmem:[#allocation8 + $0x1f0] sm:$0xf]
    %v548 = vld [vmem:[#allocation8 + $0x1f4] sm:$0xf]
    %v549 = vld [vmem:[#allocation8 + $0x1f8] sm:$0xf]
    %v550 = vld [vmem:[#allocation8 + $0x1fc] sm:$0xf]
    %v551 = vld [vmem:[%s4] sm:$0x1]
    %v553 = vlaneseq
    %v554 = vshrl.u32 %v553, 7
    %v555 = vsub.s32 0, %v554
    %v556 = vrot.slane %v551, %v555
    %v686 = vunpack.c.l.b16 %v423
    %v687 = vunpack.c.l.b16 %v424
    %v688 = vunpack.c.l.b16 %v425
    %v689 = vunpack.c.l.b16 %v426
    %v690 = vunpack.c.l.b16 %v427
    %v691 = vunpack.c.l.b16 %v428
    %v692 = vunpack.c.l.b16 %v429
    %v693 = vunpack.c.l.b16 %v430
    %v694 = vunpack.c.l.b16 %v431
    %v695 = vunpack.c.l.b16 %v432
    %v696 = vunpack.c.l.b16 %v433
    %v697 = vunpack.c.l.b16 %v434
    %v698 = vunpack.c.l.b16 %v435
    %v699 = vunpack.c.l.b16 %v436
    %v700 = vunpack.c.l.b16 %v437
    %v701 = vunpack.c.l.b16 %v438
    %v702 = vunpack.c.l.b16 %v439
    %v703 = vunpack.c.l.b16 %v440
    %v704 = vunpack.c.l.b16 %v441
    %v705 = vunpack.c.l.b16 %v442
    %v706 = vunpack.c.l.b16 %v443
    %v707 = vunpack.c.l.b16 %v444
    %v708 = vunpack.c.l.b16 %v445
    %v709 = vunpack.c.l.b16 %v446
    %v710 = vunpack.c.l.b16 %v447
    %v711 = vunpack.c.l.b16 %v448
    %v712 = vunpack.c.l.b16 %v449
    %v713 = vunpack.c.l.b16 %v450
    %v714 = vunpack.c.l.b16 %v451
    %v715 = vunpack.c.l.b16 %v452
    %v716 = vunpack.c.l.b16 %v453
    %v717 = vunpack.c.l.b16 %v454
    %v718 = vunpack.c.l.b16 %v455
    %v719 = vunpack.c.l.b16 %v456
    %v720 = vunpack.c.l.b16 %v457
    %v721 = vunpack.c.l.b16 %v458
    %v722 = vunpack.c.l.b16 %v459
    %v723 = vunpack.c.l.b16 %v460
    %v724 = vunpack.c.l.b16 %v461
    %v725 = vunpack.c.l.b16 %v462
    %v726 = vunpack.c.l.b16 %v463
    %v727 = vunpack.c.l.b16 %v464
    %v728 = vunpack.c.l.b16 %v465
    %v729 = vunpack.c.l.b16 %v466
    %v730 = vunpack.c.l.b16 %v467
    %v731 = vunpack.c.l.b16 %v468
    %v732 = vunpack.c.l.b16 %v469
    %v733 = vunpack.c.l.b16 %v470
    %v734 = vunpack.c.l.b16 %v471
    %v735 = vunpack.c.l.b16 %v472
    %v736 = vunpack.c.l.b16 %v473
    %v737 = vunpack.c.l.b16 %v474
    %v738 = vunpack.c.l.b16 %v475
    %v739 = vunpack.c.l.b16 %v476
    %v740 = vunpack.c.l.b16 %v477
    %v741 = vunpack.c.l.b16 %v478
    %v742 = vunpack.c.l.b16 %v479
    %v743 = vunpack.c.l.b16 %v480
    %v744 = vunpack.c.l.b16 %v481
    %v745 = vunpack.c.l.b16 %v482
    %v746 = vunpack.c.l.b16 %v483
    %v747 = vunpack.c.l.b16 %v484
    %v748 = vunpack.c.l.b16 %v485
    %v749 = vunpack.c.l.b16 %v486
    %v750 = vunpack.c.l.b16 %v487
    %v751 = vunpack.c.l.b16 %v488
    %v752 = vunpack.c.l.b16 %v489
    %v753 = vunpack.c.l.b16 %v490
    %v754 = vunpack.c.l.b16 %v491
    %v755 = vunpack.c.l.b16 %v492
    %v756 = vunpack.c.l.b16 %v493
    %v757 = vunpack.c.l.b16 %v494
    %v758 = vunpack.c.l.b16 %v495
    %v759 = vunpack.c.l.b16 %v496
    %v760 = vunpack.c.l.b16 %v497
    %v761 = vunpack.c.l.b16 %v498
    %v762 = vunpack.c.l.b16 %v499
    %v763 = vunpack.c.l.b16 %v500
    %v764 = vunpack.c.l.b16 %v501
    %v765 = vunpack.c.l.b16 %v502
    %v766 = vunpack.c.l.b16 %v503
    %v767 = vunpack.c.l.b16 %v504
    %v768 = vunpack.c.l.b16 %v505
    %v769 = vunpack.c.l.b16 %v506
    %v770 = vunpack.c.l.b16 %v507
    %v771 = vunpack.c.l.b16 %v508
    %v772 = vunpack.c.l.b16 %v509
    %v773 = vunpack.c.l.b16 %v510
    %v774 = vunpack.c.l.b16 %v511
    %v775 = vunpack.c.l.b16 %v512
    %v776 = vunpack.c.l.b16 %v513
    %v777 = vunpack.c.l.b16 %v514
    %v778 = vunpack.c.l.b16 %v515
    %v779 = vunpack.c.l.b16 %v516
    %v780 = vunpack.c.l.b16 %v517
    %v781 = vunpack.c.l.b16 %v518
    %v782 = vunpack.c.l.b16 %v519
    %v783 = vunpack.c.l.b16 %v520
    %v784 = vunpack.c.l.b16 %v521
    %v785 = vunpack.c.l.b16 %v522
    %v786 = vunpack.c.l.b16 %v523
    %v787 = vunpack.c.l.b16 %v524
    %v788 = vunpack.c.l.b16 %v525
    %v789 = vunpack.c.l.b16 %v526
    %v790 = vunpack.c.l.b16 %v527
    %v791 = vunpack.c.l.b16 %v528
    %v792 = vunpack.c.l.b16 %v529
    %v793 = vunpack.c.l.b16 %v530
    %v794 = vunpack.c.l.b16 %v531
    %v795 = vunpack.c.l.b16 %v532
    %v796 = vunpack.c.l.b16 %v533
    %v797 = vunpack.c.l.b16 %v534
    %v798 = vunpack.c.l.b16 %v535
    %v799 = vunpack.c.l.b16 %v536
    %v800 = vunpack.c.l.b16 %v537
    %v801 = vunpack.c.l.b16 %v538
    %v802 = vunpack.c.l.b16 %v539
    %v803 = vunpack.c.l.b16 %v540
    %v804 = vunpack.c.l.b16 %v541
    %v805 = vunpack.c.l.b16 %v542
    %v806 = vunpack.c.l.b16 %v543
    %v807 = vunpack.c.l.b16 %v544
    %v808 = vunpack.c.l.b16 %v545
    %v809 = vunpack.c.l.b16 %v546
    %v810 = vunpack.c.l.b16 %v547
    %v811 = vunpack.c.l.b16 %v548
    %v812 = vunpack.c.l.b16 %v549
    %v813 = vunpack.c.l.b16 %v550
    %v814 = vpack.c.b16 %v687, %v686
    %v815 = vpack.c.b16 %v689, %v688
    %v816 = vpack.c.b16 %v691, %v690
    %v817 = vpack.c.b16 %v693, %v692
    %v818 = vpack.c.b16 %v695, %v694
    %v819 = vpack.c.b16 %v697, %v696
    %v820 = vpack.c.b16 %v699, %v698
    %v821 = vpack.c.b16 %v701, %v700
    %v822 = vpack.c.b16 %v703, %v702
    %v823 = vpack.c.b16 %v705, %v704
    %v824 = vpack.c.b16 %v707, %v706
    %v825 = vpack.c.b16 %v709, %v708
    %v826 = vpack.c.b16 %v711, %v710
    %v827 = vpack.c.b16 %v713, %v712
    %v828 = vpack.c.b16 %v715, %v714
    %v829 = vpack.c.b16 %v717, %v716
    %v830 = vpack.c.b16 %v719, %v718
    %v831 = vpack.c.b16 %v721, %v720
    %v832 = vpack.c.b16 %v723, %v722
    %v833 = vpack.c.b16 %v725, %v724
    %v834 = vpack.c.b16 %v727, %v726
    %v835 = vpack.c.b16 %v729, %v728
    %v836 = vpack.c.b16 %v731, %v730
    %v837 = vpack.c.b16 %v733, %v732
    %v838 = vpack.c.b16 %v735, %v734
    %v839 = vpack.c.b16 %v737, %v736
    %v840 = vpack.c.b16 %v739, %v738
    %v841 = vpack.c.b16 %v741, %v740
    %v842 = vpack.c.b16 %v743, %v742
    %v843 = vpack.c.b16 %v745, %v744
    %v844 = vpack.c.b16 %v747, %v746
    %v845 = vpack.c.b16 %v749, %v748
    %v846 = vpack.c.b16 %v751, %v750
    %v847 = vpack.c.b16 %v753, %v752
    %v848 = vpack.c.b16 %v755, %v754
    %v849 = vpack.c.b16 %v757, %v756
    %v850 = vpack.c.b16 %v759, %v758
    %v851 = vpack.c.b16 %v761, %v760
    %v852 = vpack.c.b16 %v763, %v762
    %v853 = vpack.c.b16 %v765, %v764
    %v854 = vpack.c.b16 %v767, %v766
    %v855 = vpack.c.b16 %v769, %v768
    %v856 = vpack.c.b16 %v771, %v770
    %v857 = vpack.c.b16 %v773, %v772
    %v858 = vpack.c.b16 %v775, %v774
    %v859 = vpack.c.b16 %v777, %v776
    %v860 = vpack.c.b16 %v779, %v778
    %v861 = vpack.c.b16 %v781, %v780
    %v862 = vpack.c.b16 %v783, %v782
    %v863 = vpack.c.b16 %v785, %v784
    %v864 = vpack.c.b16 %v787, %v786
    %v865 = vpack.c.b16 %v789, %v788
    %v866 = vpack.c.b16 %v791, %v790
    %v867 = vpack.c.b16 %v793, %v792
    %v868 = vpack.c.b16 %v795, %v794
    %v869 = vpack.c.b16 %v797, %v796
    %v870 = vpack.c.b16 %v799, %v798
    %v871 = vpack.c.b16 %v801, %v800
    %v872 = vpack.c.b16 %v803, %v802
    %v873 = vpack.c.b16 %v805, %v804
    %v874 = vpack.c.b16 %v807, %v806
    %v875 = vpack.c.b16 %v809, %v808
    %v876 = vpack.c.b16 %v811, %v810
    %v877 = vpack.c.b16 %v813, %v812
    %942 = vmatprep.subr.bf16.mxu0 0
    %943 = vmatpush1.bf16.msra.mxu0 %v821
    %944 = vmatprep.subr.bf16.mxu0 0
    %945 = vmatpush1.bf16.msra.mxu0 %v820
    %946 = vmatprep.subr.bf16.mxu0 0
    %947 = vmatpush1.bf16.msra.mxu0 %v819
    %948 = vmatprep.subr.bf16.mxu0 0
    %949 = vmatpush1.bf16.msra.mxu0 %v818
    %950 = vmatprep.subr.bf16.mxu0 0
    %951 = vmatpush1.bf16.msra.mxu0 %v817
    %952 = vmatprep.subr.bf16.mxu0 0
    %953 = vmatpush1.bf16.msra.mxu0 %v816
    %954 = vmatprep.subr.bf16.mxu0 0
    %955 = vmatpush1.bf16.msra.mxu0 %v815
    %956 = vmatprep.subr.bf16.mxu0 0
    %957 = vmatpush1.bf16.msra.mxu0 %v814
    %958 = vmatprep.subr.bf16.mxu0 0
    %959 = vmatpush2.bf16.msra.mxu0 %v829
    %960 = vmatprep.subr.bf16.mxu0 0
    %961 = vmatpush2.bf16.msra.mxu0 %v828
    %962 = vmatprep.subr.bf16.mxu0 0
    %963 = vmatpush2.bf16.msra.mxu0 %v827
    %964 = vmatprep.subr.bf16.mxu0 0
    %965 = vmatpush2.bf16.msra.mxu0 %v826
    %966 = vmatprep.subr.bf16.mxu0 0
    %967 = vmatpush2.bf16.msra.mxu0 %v825
    %968 = vmatprep.subr.bf16.mxu0 0
    %969 = vmatpush2.bf16.msra.mxu0 %v824
    %970 = vmatprep.subr.bf16.mxu0 0
    %971 = vmatpush2.bf16.msra.mxu0 %v823
    %972 = vmatprep.subr.bf16.mxu0 0
    %973 = vmatpush2.bf16.msra.mxu0 %v822
    %974 = vmatprep.mubr.bf16.mxu0 %v416
    %975 = vmatmul.mubr.bf16.gmra.mxu0 %v415
    %v976 = vpop.f32.mrf.mxu0
    %v977 = vadd.f32 %v556, %v976
    %v978 = vpop.f32.mrf.mxu0
    %v979 = vpop.f32.mrf.mxu0
    %v980 = vpop.f32.mrf.mxu0
    %981 = vdwg.mxu0
    %982 = vmatprep.subr.bf16.mxu0 0
    %983 = vmatpush1.bf16.msra.mxu0 %v837
    %984 = vmatprep.subr.bf16.mxu0 0
    %985 = vmatpush1.bf16.msra.mxu0 %v836
    %986 = vmatprep.subr.bf16.mxu0 0
    %987 = vmatpush1.bf16.msra.mxu0 %v835
    %988 = vmatprep.subr.bf16.mxu0 0
    %989 = vmatpush1.bf16.msra.mxu0 %v834
    %990 = vmatprep.subr.bf16.mxu0 0
    %991 = vmatpush1.bf16.msra.mxu0 %v833
    %992 = vmatprep.subr.bf16.mxu0 0
    %993 = vmatpush1.bf16.msra.mxu0 %v832
    %994 = vmatprep.subr.bf16.mxu0 0
    %995 = vmatpush1.bf16.msra.mxu0 %v831
    %996 = vmatprep.subr.bf16.mxu0 0
    %997 = vmatpush1.bf16.msra.mxu0 %v830
    %998 = vmatprep.subr.bf16.mxu0 0
    %999 = vmatpush2.bf16.msra.mxu0 %v845
    %1000 = vmatprep.subr.bf16.mxu0 0
    %1001 = vmatpush2.bf16.msra.mxu0 %v844
    %1002 = vmatprep.subr.bf16.mxu0 0
    %1003 = vmatpush2.bf16.msra.mxu0 %v843
    %1004 = vmatprep.subr.bf16.mxu0 0
    %1005 = vmatpush2.bf16.msra.mxu0 %v842
    %1006 = vmatprep.subr.bf16.mxu0 0
    %1007 = vmatpush2.bf16.msra.mxu0 %v841
    %1008 = vmatprep.subr.bf16.mxu0 0
    %1009 = vmatpush2.bf16.msra.mxu0 %v840
    %1010 = vmatprep.subr.bf16.mxu0 0
    %1011 = vmatpush2.bf16.msra.mxu0 %v839
    %1012 = vmatprep.subr.bf16.mxu0 0
    %1013 = vmatpush2.bf16.msra.mxu0 %v838
    %1014 = vmatprep.mubr.bf16.mxu0 %v418
    %1015 = vmatmul.mubr.bf16.gmra.mxu0 %v417
    %v1016 = vpop.f32.mrf.mxu0
    %v1017 = vadd.f32 %v977, %v1016
    %v1018 = vpop.f32.mrf.mxu0
    %v1019 = vpop.f32.mrf.mxu0
    %v1020 = vpop.f32.mrf.mxu0
    %1021 = vdwg.mxu0
    %1022 = vmatprep.subr.bf16.mxu0 0
    %1023 = vmatpush1.bf16.msra.mxu0 %v853
    %1024 = vmatprep.subr.bf16.mxu0 0
    %1025 = vmatpush1.bf16.msra.mxu0 %v852
    %1026 = vmatprep.subr.bf16.mxu0 0
    %1027 = vmatpush1.bf16.msra.mxu0 %v851
    %1028 = vmatprep.subr.bf16.mxu0 0
    %1029 = vmatpush1.bf16.msra.mxu0 %v850
    %1030 = vmatprep.subr.bf16.mxu0 0
    %1031 = vmatpush1.bf16.msra.mxu0 %v849
    %1032 = vmatprep.subr.bf16.mxu0 0
    %1033 = vmatpush1.bf16.msra.mxu0 %v848
    %1034 = vmatprep.subr.bf16.mxu0 0
    %1035 = vmatpush1.bf16.msra.mxu0 %v847
    %1036 = vmatprep.subr.bf16.mxu0 0
    %1037 = vmatpush1.bf16.msra.mxu0 %v846
    %1038 = vmatprep.subr.bf16.mxu0 0
    %1039 = vmatpush2.bf16.msra.mxu0 %v861
    %1040 = vmatprep.subr.bf16.mxu0 0
    %1041 = vmatpush2.bf16.msra.mxu0 %v860
    %1042 = vmatprep.subr.bf16.mxu0 0
    %1043 = vmatpush2.bf16.msra.mxu0 %v859
    %1044 = vmatprep.subr.bf16.mxu0 0
    %1045 = vmatpush2.bf16.msra.mxu0 %v858
    %1046 = vmatprep.subr.bf16.mxu0 0
    %1047 = vmatpush2.bf16.msra.mxu0 %v857
    %1048 = vmatprep.subr.bf16.mxu0 0
    %1049 = vmatpush2.bf16.msra.mxu0 %v856
    %1050 = vmatprep.subr.bf16.mxu0 0
    %1051 = vmatpush2.bf16.msra.mxu0 %v855
    %1052 = vmatprep.subr.bf16.mxu0 0
    %1053 = vmatpush2.bf16.msra.mxu0 %v854
    %1054 = vmatprep.mubr.bf16.mxu0 %v420
    %1055 = vmatmul.mubr.bf16.gmra.mxu0 %v419
    %v1056 = vpop.f32.mrf.mxu0
    %v1057 = vadd.f32 %v1017, %v1056
    %v1058 = vpop.f32.mrf.mxu0
    %v1059 = vpop.f32.mrf.mxu0
    %v1060 = vpop.f32.mrf.mxu0
    %1061 = vdwg.mxu0
    %1062 = vmatprep.subr.bf16.mxu0 0
    %1063 = vmatpush1.bf16.msra.mxu0 %v869
    %1064 = vmatprep.subr.bf16.mxu0 0
    %1065 = vmatpush1.bf16.msra.mxu0 %v868
    %1066 = vmatprep.subr.bf16.mxu0 0
    %1067 = vmatpush1.bf16.msra.mxu0 %v867
    %1068 = vmatprep.subr.bf16.mxu0 0
    %1069 = vmatpush1.bf16.msra.mxu0 %v866
    %1070 = vmatprep.subr.bf16.mxu0 0
    %1071 = vmatpush1.bf16.msra.mxu0 %v865
    %1072 = vmatprep.subr.bf16.mxu0 0
    %1073 = vmatpush1.bf16.msra.mxu0 %v864
    %1074 = vmatprep.subr.bf16.mxu0 0
    %1075 = vmatpush1.bf16.msra.mxu0 %v863
    %1076 = vmatprep.subr.bf16.mxu0 0
    %1077 = vmatpush1.bf16.msra.mxu0 %v862
    %1078 = vmatprep.subr.bf16.mxu0 0
    %1079 = vmatpush2.bf16.msra.mxu0 %v877
    %1080 = vmatprep.subr.bf16.mxu0 0
    %1081 = vmatpush2.bf16.msra.mxu0 %v876
    %1082 = vmatprep.subr.bf16.mxu0 0
    %1083 = vmatpush2.bf16.msra.mxu0 %v875
    %1084 = vmatprep.subr.bf16.mxu0 0
    %1085 = vmatpush2.bf16.msra.mxu0 %v874
    %1086 = vmatprep.subr.bf16.mxu0 0
    %1087 = vmatpush2.bf16.msra.mxu0 %v873
    %1088 = vmatprep.subr.bf16.mxu0 0
    %1089 = vmatpush2.bf16.msra.mxu0 %v872
    %1090 = vmatprep.subr.bf16.mxu0 0
    %1091 = vmatpush2.bf16.msra.mxu0 %v871
    %1092 = vmatprep.subr.bf16.mxu0 0
    %1093 = vmatpush2.bf16.msra.mxu0 %v870
    %1094 = vmatprep.mubr.bf16.mxu0 %v422
    %1095 = vmatmul.mubr.bf16.gmra.mxu0 %v421
    %v1096 = vpop.f32.mrf.mxu0
    %v1097 = vadd.f32 %v1057, %v1096
    %v1098 = vpop.f32.mrf.mxu0
    %v1099 = vpop.f32.mrf.mxu0
    %v1100 = vpop.f32.mrf.mxu0
    %1101 = vdwg.mxu0
    %1102 = vst [vmem:[#allocation10] sm:$0xff] %v1097
    // Predicated region
    $region38: #{tpu_custom_call.1} parent=1 // pred_check
      _
    $region39: #{tpu_custom_call.1} parent=1 // pred_check_branch
      %1104 = sbr.rel (0) target = $region41
    $region40: #{tpu_custom_call.1} parent=1 // pred_region
      %s1106 = ssub.s32 128, 32
      %1107 = vsyncadd [#allocation4], %s1106
      %s1108 = sshll.u32 [#allocation10], 4
      %s1109 = int_to_ptr.vmem [resolvable:$true] %s1108
      %1114 = dma.vmem_to_hbm [thread:$0]  %s1109, 32, %s5, [#allocation4], 32, 32, 2
    $region41: #{tpu_custom_call.1} parent=1 // pred_fallthru
      _
    // Predicated region
    $region42: #{tpu_custom_call.1} parent=1 // pred_check
      _
    $region43: #{tpu_custom_call.1} parent=1 // pred_check_branch
      %1116 = sbr.rel (0) target = $region45
    $region44: #{tpu_custom_call.1} parent=1 // pred_region
      %1117 = dma.done [#allocation4], 128
    $region45: #{tpu_custom_call.1} parent=1 // pred_fallthru
      _
    %1118 = vsyncpa [#allocation3], 1
    %1119 = vsyncpa [#allocation6], 1
    %1120 = vsyncpa [#allocation9], 1
    %1121 = vsyncpa [#allocation4], 1

</llo_original>
